<compile_context>
chip_gen: v7x
topology: tpu7x:2x2x1
jax: 0.10.0
libtpu: 0.0.40
codegen_flags: <defaults>
</compile_context>

<pallas_src>
import math
from functools import partial

import jax
import jax.numpy as jnp
from jax.experimental import pallas as pl
from jax.experimental.pallas import tpu as pltpu

N2 = 64
IN_DIM = 2 * N2        # 128 input features
H = 20                 # hidden width of the original layers
HT = 32                # padded trunk width (20 -> 32, sublane aligned)
HF = 3 * H             # 60 = fused-head hidden width
HP = 64                # padded fused-head width
OUT_DIM = 3            # [u, v, p]
OUT_PAD = 8            # output rows padded to a full sublane group


# ----------------------------- kernel ---------------------------------------

def _make_kernel(n_chunks):
    """Kernel for one batch tile (feature-major).  The tile is split into
    `n_chunks` lane chunks so the tanh (EUP) of one chunk can overlap the
    matmul (MXU) of another."""

    def kernel(x_ref, w0_ref, w12_ref, wf1_ref, wf2_ref, wf3_ref,
               b012_ref, bf12_ref, bf3_ref, out_ref):
        # x_ref  : [128, tile_n]  feature-major batch tile
        # w0_ref : [32, 128]      trunk layer-0 weight, (out, in), zero-padded
        # w12_ref: [2, 32, 32]    trunk layers 1-2
        # wf1_ref: [64, 32]       fused-head layer (heads concatenated)
        # wf2_ref: [64, 64]       fused-head layer (block-diagonal)
        # wf3_ref: [8, 64]        fused-head output layer (rows 3..7 zero)
        # b*_refs: float32 biases as columns
        # out_ref: [8, tile_n]    lane-dense, sublane-aligned output block
        cdt = w0_ref.dtype                       # matmul operand dtype (bf16 or f32)
        tile = x_ref.shape[1]
        cw = tile // n_chunks

        w0 = w0_ref[...]
        w1, w2 = w12_ref[0], w12_ref[1]
        wf1, wf2, wf3 = wf1_ref[...], wf2_ref[...], wf3_ref[...]
        b0, b1, b2 = b012_ref[0], b012_ref[1], b012_ref[2]
        bf1, bf2 = bf12_ref[0], bf12_ref[1]
        bf3 = bf3_ref[...]

        def mm(w, h):
            # MXU matmul, low-precision operands, f32 accumulation.
            return jnp.dot(w, h.astype(cdt), preferred_element_type=jnp.float32)

        hs = [x_ref[:, c * cw:(c + 1) * cw] for c in range(n_chunks)]
        hs = [jnp.tanh(mm(w0, h) + b0) for h in hs]      # trunk layer 0
        hs = [jnp.tanh(mm(w1, h) + b1) for h in hs]      # trunk layer 1
        hs = [mm(w2, h) + b2 for h in hs]                # trunk layer 2 (plain)
        hs = [jnp.tanh(mm(wf1, h) + bf1) for h in hs]    # heads layer 0 (fused)
        hs = [jnp.tanh(mm(wf2, h) + bf2) for h in hs]    # heads layer 1 (fused)
        for c in range(n_chunks):                         # heads layer 2 + store
            out_ref[:, c * cw:(c + 1) * cw] = mm(wf3, hs[c]) + bf3

    return kernel


# ----------------------------- param packing --------------------------------

def _block_diag3(a, b, c):
    ra, ca = a.shape
    rb, cb = b.shape
    rc, cc = c.shape
    out = jnp.zeros((ra + rb + rc, ca + cb + cc), a.dtype)
    out = out.at[:ra, :ca].set(a)
    out = out.at[ra:ra + rb, ca:ca + cb].set(b)
    out = out.at[ra + rb:, ca + cb:].set(c)
    return out


def pack_params(params, *, matmul_dtype=jnp.bfloat16):
    """params: 12 (W, b) pairs in torch layout (W: (in,out), b: (1,out)).

    Returns head-fused, transposed ((out, in)), zero-padded weight/bias slabs.
    Padded rows/cols stay exactly zero through bias-add and tanh, so no
    in-kernel masking is needed."""
    (W0, b0), (W1, b1), (W2, b2) = params[0:3]
    hu, hv, hp = params[3:6], params[6:9], params[9:12]

    # Fuse the three heads: first head layer concat, later layers block-diagonal.
    Wf1 = jnp.concatenate([hu[0][0], hv[0][0], hp[0][0]], axis=1)   # (20, 60)
    bf1 = jnp.concatenate([hu[0][1], hv[0][1], hp[0][1]], axis=1)   # (1, 60)
    Wf2 = _block_diag3(hu[1][0], hv[1][0], hp[1][0])                # (60, 60)
    bf2 = jnp.concatenate([hu[1][1], hv[1][1], hp[1][1]], axis=1)   # (1, 60)
    Wf3 = _block_diag3(hu[2][0], hv[2][0], hp[2][0])                # (60, 3)
    bf3 = jnp.concatenate([hu[2][1], hv[2][1], hp[2][1]], axis=1)   # (1, 3)

    def pad_t(a, rows, cols):      # transpose to (out, in) and zero-pad
        at = a.T
        return jnp.pad(at, ((0, rows - at.shape[0]), (0, cols - at.shape[1])))

    w0 = pad_t(W0, HT, IN_DIM).astype(matmul_dtype)                           # (32, 128)
    w12 = jnp.stack([pad_t(W1, HT, HT), pad_t(W2, HT, HT)]).astype(matmul_dtype)  # (2, 32, 32)
    wf1 = pad_t(Wf1, HP, HT).astype(matmul_dtype)                             # (64, 32)
    wf2 = pad_t(Wf2, HP, HP).astype(matmul_dtype)                             # (64, 64)
    wf3 = pad_t(Wf3, OUT_PAD, HP).astype(matmul_dtype)                        # (8, 64)
    b012 = jnp.stack([pad_t(b, HT, 1) for b in (b0, b1, b2)]).astype(jnp.float32)   # (3, 32, 1)
    bf12 = jnp.stack([pad_t(b, HP, 1) for b in (bf1, bf2)]).astype(jnp.float32)     # (2, 64, 1)
    bf3p = pad_t(bf3, OUT_PAD, 1).astype(jnp.float32)                               # (8, 1)
    return w0, w12, wf1, wf2, wf3, b012, bf12, bf3p


# ----------------------------- wrapper ---------------------------------------

def _pick_tile(N, *, lane_quantum=256, max_tile=4096, min_steps=2):
    """Large tiles amortize the ~0.35us/grid-step overhead (VMEM use is tiny even
    at 4096), but keep >=min_steps grid steps so both v7x TensorCores get work."""
    max_tile = max(lane_quantum, (max_tile // lane_quantum) * lane_quantum)
    t = -(-N // min_steps)                                # ceil(N / min_steps)
    t = -(-max(t, lane_quantum) // lane_quantum) * lane_quantum
    return min(t, max_tile)


@partial(jax.jit, static_argnames=("tile_n", "n_chunks"))
def dnn_forward(x, packed, *, tile_n=None, n_chunks=2):
    """x: [N, 128] float32; packed = pack_params(params).  Returns [N, 3] float32."""
    w0, w12, wf1, wf2, wf3, b012, bf12, bf3 = packed
    N, D = x.shape
    assert D == IN_DIM
    lane_q = 128 * n_chunks
    if tile_n is None:
        tile_n = _pick_tile(N, lane_quantum=lane_q)
    assert tile_n % lane_q == 0, "tile_n must be a multiple of 128 * n_chunks"

    # Feature-major input: lane axis = batch, so layer 0 is a plain
    # [32,128]@[128,tile] dot with no in-kernel XLU transpose.  Under jit the
    # transpose fuses with the upstream producer.
    x_t = x.T

    # Ragged N: partial last block (reads/writes are clipped) instead of an
    # extra whole-array HBM pad copy of x.
    grid = (pl.cdiv(N, tile_n),)

    out_t = pl.pallas_call(
        _make_kernel(n_chunks),
        out_shape=jax.ShapeDtypeStruct((OUT_PAD, N), jnp.float32),
        grid=grid,
        in_specs=[
            pl.BlockSpec((IN_DIM, tile_n), lambda i: (0, i)),    # batch tile of x^T
            pl.BlockSpec(w0.shape, lambda i: (0, 0)),            # weights stay resident
            pl.BlockSpec(w12.shape, lambda i: (0, 0, 0)),
            pl.BlockSpec(wf1.shape, lambda i: (0, 0)),
            pl.BlockSpec(wf2.shape, lambda i: (0, 0)),
            pl.BlockSpec(wf3.shape, lambda i: (0, 0)),
            pl.BlockSpec(b012.shape, lambda i: (0, 0, 0)),
            pl.BlockSpec(bf12.shape, lambda i: (0, 0, 0)),
            pl.BlockSpec(bf3.shape, lambda i: (0, 0)),
        ],
        out_specs=pl.BlockSpec((OUT_PAD, tile_n), lambda i: (0, i)),
        compiler_params=pltpu.CompilerParams(
            dimension_semantics=("parallel",)),    # batch grid shards across TCs (v7x)
    )(x_t, w0, w12, wf1, wf2, wf3, b012, bf12, bf3)

    return out_t[:OUT_DIM, :].T          # tiny (3, N) transpose back to [N, 3]


# ----------------------------- params & reference ----------------------------

def _init_linear(key, fan_in, fan_out):
    kw, kb = jax.random.split(key)
    limit = math.sqrt(6.0 / (fan_in + fan_out))                    # xavier_uniform_
    W = jax.random.uniform(kw, (fan_in, fan_out), jnp.float32, -limit, limit)
    bb = 1.0 / math.sqrt(fan_in)                                   # torch Linear bias default
    b = jax.random.uniform(kb, (1, fan_out), jnp.float32, -bb, bb)
    return W, b


def init_params(key):
    dims = [
        (IN_DIM, H), (H, H), (H, H),   # trunk "layers"
        (H, H), (H, H), (H, 1),        # layers_u
        (H, H), (H, H), (H, 1),        # layers_v
        (H, H), (H, H), (H, 1),        # layers_p
    ]
    params = []
    for d in dims:
        key, sub = jax.random.split(key)
        params.append(_init_linear(sub, *d))
    return params


def dnn_reference(x, params):
    """Pure-JAX reference (unfused, row-major) for correctness checking."""
    def mlp(h, pairs, acts):
        for (W, b), act in zip(pairs, acts):
            h = h @ W + b
            if act:
                h = jnp.tanh(h)
        return h
    trunk, hu, hv, hp = params[0:3], params[3:6], params[6:9], params[9:12]
    acts = [True, True, False]
    h = mlp(x, trunk, acts)
    return jnp.concatenate([mlp(h, hu, acts), mlp(h, hv, acts), mlp(h, hp, acts)], axis=1)


# ----------------------------- main ------------------------------------------

if __name__ == "__main__":
    key = jax.random.PRNGKey(0)
    kx, kp = jax.random.split(key)

    params = init_params(kp)
    packed_bf16 = pack_params(params)                               # MXU-rate bf16 operands
    packed_f32 = pack_params(params, matmul_dtype=jnp.float32)      # exact-semantics path

    # Main test (default bf16 matmul operands; auto tile -> 2 grid steps).
    N = 512
    x = jax.random.normal(kx, (N, IN_DIM), jnp.float32)
    ref = dnn_reference(x, params)

    out = jax.block_until_ready(dnn_forward(x, packed_bf16))
    assert out.shape == (N, OUT_DIM)
    err = float(jnp.max(jnp.abs(out - ref)))
    assert err < 1e-1, f"max abs err (bf16 matmuls) {err}"

    # Exact f32 path must match the reference tightly.
    out_f32 = jax.block_until_ready(dnn_forward(x, packed_f32))
    err_f32 = float(jnp.max(jnp.abs(out_f32 - ref)))
    assert err_f32 < 1e-4, f"max abs err (f32 matmuls) {err_f32}"

    # Ragged-tail test: N not a multiple of the tile (partial last block, no pad copy).
    Nr = 300
    xr = jax.random.normal(jax.random.PRNGKey(1), (Nr, IN_DIM), jnp.float32)
    ref_r = dnn_reference(xr, params)
    out_r = jax.block_until_ready(dnn_forward(xr, packed_f32))
    assert out_r.shape == (Nr, OUT_DIM)
    err_r = float(jnp.max(jnp.abs(out_r - ref_r)))
    assert err_r < 1e-4, f"max abs err (ragged) {err_r}"

    # Explicit tile / chunk override exercises the sweepable knobs.
    out_big = jax.block_until_ready(dnn_forward(x, packed_bf16, tile_n=512, n_chunks=4))
    err_big = float(jnp.max(jnp.abs(out_big - ref)))
    assert err_big < 1e-1, f"max abs err (tile 512, 4 chunks) {err_big}"

    print("KERNEL_OK")
</pallas_src>

<mosaic_0001>
module attributes {stable_mosaic.version = 11 : i64} {
  func.func @kernel(%arg0: i32, %arg1: memref<128x256xf32, #tpu.memory_space<vmem>>, %arg2: memref<32x128xbf16, #tpu.memory_space<vmem>>, %arg3: memref<2x32x32xbf16, #tpu.memory_space<vmem>>, %arg4: memref<64x32xbf16, #tpu.memory_space<vmem>>, %arg5: memref<64x64xbf16, #tpu.memory_space<vmem>>, %arg6: memref<8x64xbf16, #tpu.memory_space<vmem>>, %arg7: memref<3x32x1xf32, #tpu.memory_space<vmem>>, %arg8: memref<2x64x1xf32, #tpu.memory_space<vmem>>, %arg9: memref<8x1xf32, #tpu.memory_space<vmem>>, %arg10: memref<8x256xf32, #tpu.memory_space<vmem>>) attributes {dimension_semantics = [#tpu.dimension_semantics<parallel>], iteration_bounds = array<i64: 2>, scalar_prefetch = 0 : i64, scratch_operands = 0 : i64, tpu.core_type = #tpu.core_type<tc>, window_params = [{transform_indices = @transform_0, window_bounds = array<i64: 128, 256>}, {pipeline_mode = #tpu.pipeline_mode<synchronous>, transform_indices = @transform_1, window_bounds = array<i64: 32, 128>}, {pipeline_mode = #tpu.pipeline_mode<synchronous>, transform_indices = @transform_2, window_bounds = array<i64: 2, 32, 32>}, {pipeline_mode = #tpu.pipeline_mode<synchronous>, transform_indices = @transform_3, window_bounds = array<i64: 64, 32>}, {pipeline_mode = #tpu.pipeline_mode<synchronous>, transform_indices = @transform_4, window_bounds = array<i64: 64, 64>}, {pipeline_mode = #tpu.pipeline_mode<synchronous>, transform_indices = @transform_5, window_bounds = array<i64: 8, 64>}, {pipeline_mode = #tpu.pipeline_mode<synchronous>, transform_indices = @transform_6, window_bounds = array<i64: 3, 32, 1>}, {pipeline_mode = #tpu.pipeline_mode<synchronous>, transform_indices = @transform_7, window_bounds = array<i64: 2, 64, 1>}, {pipeline_mode = #tpu.pipeline_mode<synchronous>, transform_indices = @transform_8, window_bounds = array<i64: 8, 1>}, {transform_indices = @transform_9, window_bounds = array<i64: 8, 256>}]} {
    %c0 = arith.constant 0 : index
    %c0_0 = arith.constant 0 : index
    %0 = vector.load %arg2[%c0, %c0_0] : memref<32x128xbf16, #tpu.memory_space<vmem>>, vector<32x128xbf16>
    %c0_1 = arith.constant 0 : index
    %c0_2 = arith.constant 0 : index
    %c0_3 = arith.constant 0 : index
    %1 = vector.load %arg3[%c0_1, %c0_2, %c0_3] : memref<2x32x32xbf16, #tpu.memory_space<vmem>>, vector<1x32x32xbf16>
    %2 = vector.shape_cast %1 : vector<1x32x32xbf16> to vector<32x32xbf16>
    %c1 = arith.constant 1 : index
    %c0_4 = arith.constant 0 : index
    %c0_5 = arith.constant 0 : index
    %3 = vector.load %arg3[%c1, %c0_4, %c0_5] : memref<2x32x32xbf16, #tpu.memory_space<vmem>>, vector<1x32x32xbf16>
    %4 = vector.shape_cast %3 : vector<1x32x32xbf16> to vector<32x32xbf16>
    %c0_6 = arith.constant 0 : index
    %c0_7 = arith.constant 0 : index
    %5 = vector.load %arg4[%c0_6, %c0_7] : memref<64x32xbf16, #tpu.memory_space<vmem>>, vector<64x32xbf16>
    %c0_8 = arith.constant 0 : index
    %c0_9 = arith.constant 0 : index
    %6 = vector.load %arg5[%c0_8, %c0_9] : memref<64x64xbf16, #tpu.memory_space<vmem>>, vector<64x64xbf16>
    %c0_10 = arith.constant 0 : index
    %c0_11 = arith.constant 0 : index
    %7 = vector.load %arg6[%c0_10, %c0_11] : memref<8x64xbf16, #tpu.memory_space<vmem>>, vector<8x64xbf16>
    %c0_12 = arith.constant 0 : index
    %c0_13 = arith.constant 0 : index
    %c0_14 = arith.constant 0 : index
    %8 = vector.load %arg7[%c0_12, %c0_13, %c0_14] : memref<3x32x1xf32, #tpu.memory_space<vmem>>, vector<1x32x1xf32>
    %9 = vector.shape_cast %8 : vector<1x32x1xf32> to vector<32x1xf32>
    %c1_15 = arith.constant 1 : index
    %c0_16 = arith.constant 0 : index
    %c0_17 = arith.constant 0 : index
    %10 = vector.load %arg7[%c1_15, %c0_16, %c0_17] : memref<3x32x1xf32, #tpu.memory_space<vmem>>, vector<1x32x1xf32>
    %11 = vector.shape_cast %10 : vector<1x32x1xf32> to vector<32x1xf32>
    %c2 = arith.constant 2 : index
    %c0_18 = arith.constant 0 : index
    %c0_19 = arith.constant 0 : index
    %12 = vector.load %arg7[%c2, %c0_18, %c0_19] : memref<3x32x1xf32, #tpu.memory_space<vmem>>, vector<1x32x1xf32>
    %13 = vector.shape_cast %12 : vector<1x32x1xf32> to vector<32x1xf32>
    %c0_20 = arith.constant 0 : index
    %c0_21 = arith.constant 0 : index
    %c0_22 = arith.constant 0 : index
    %14 = vector.load %arg8[%c0_20, %c0_21, %c0_22] : memref<2x64x1xf32, #tpu.memory_space<vmem>>, vector<1x64x1xf32>
    %15 = vector.shape_cast %14 : vector<1x64x1xf32> to vector<64x1xf32>
    %c1_23 = arith.constant 1 : index
    %c0_24 = arith.constant 0 : index
    %c0_25 = arith.constant 0 : index
    %16 = vector.load %arg8[%c1_23, %c0_24, %c0_25] : memref<2x64x1xf32, #tpu.memory_space<vmem>>, vector<1x64x1xf32>
    %17 = vector.shape_cast %16 : vector<1x64x1xf32> to vector<64x1xf32>
    %c0_26 = arith.constant 0 : index
    %c0_27 = arith.constant 0 : index
    %18 = vector.load %arg9[%c0_26, %c0_27] : memref<8x1xf32, #tpu.memory_space<vmem>>, vector<8x1xf32>
    %c0_28 = arith.constant 0 : index
    %c0_29 = arith.constant 0 : index
    %19 = vector.load %arg1[%c0_28, %c0_29] : memref<128x256xf32, #tpu.memory_space<vmem>>, vector<128x128xf32>
    %c0_30 = arith.constant 0 : index
    %c128 = arith.constant 128 : index
    %20 = vector.load %arg1[%c0_30, %c128] : memref<128x256xf32, #tpu.memory_space<vmem>>, vector<128x128xf32>
    %21 = arith.truncf %19 : vector<128x128xf32> to vector<128x128xbf16>
    %cst = arith.constant dense<0.000000e+00> : vector<32x128xf32>
    %22 = tpu.matmul %0, %21, %cst {dimension_numbers = #tpu.dot_dimension_numbers<[1], [0], [0], [1], [0, 0, 1, 1], [], []>} : vector<32x128xbf16>, vector<128x128xbf16>, vector<32x128xf32> -> vector<32x128xf32>
    %23 = vector.broadcast %9 : vector<32x1xf32> to vector<32x128xf32>
    %24 = arith.addf %22, %23 : vector<32x128xf32>
    %25 = math.tanh %24 : vector<32x128xf32>
    %26 = arith.truncf %20 : vector<128x128xf32> to vector<128x128xbf16>
    %cst_31 = arith.constant dense<0.000000e+00> : vector<32x128xf32>
    %27 = tpu.matmul %0, %26, %cst_31 {dimension_numbers = #tpu.dot_dimension_numbers<[1], [0], [0], [1], [0, 0, 1, 1], [], []>} : vector<32x128xbf16>, vector<128x128xbf16>, vector<32x128xf32> -> vector<32x128xf32>
    %28 = vector.broadcast %9 : vector<32x1xf32> to vector<32x128xf32>
    %29 = arith.addf %27, %28 : vector<32x128xf32>
    %30 = math.tanh %29 : vector<32x128xf32>
    %31 = arith.truncf %25 : vector<32x128xf32> to vector<32x128xbf16>
    %cst_32 = arith.constant dense<0.000000e+00> : vector<32x128xf32>
    %32 = tpu.matmul %2, %31, %cst_32 {dimension_numbers = #tpu.dot_dimension_numbers<[1], [0], [0], [1], [0, 0, 1, 1], [], []>} : vector<32x32xbf16>, vector<32x128xbf16>, vector<32x128xf32> -> vector<32x128xf32>
    %33 = vector.broadcast %11 : vector<32x1xf32> to vector<32x128xf32>
    %34 = arith.addf %32, %33 : vector<32x128xf32>
    %35 = math.tanh %34 : vector<32x128xf32>
    %36 = arith.truncf %30 : vector<32x128xf32> to vector<32x128xbf16>
    %cst_33 = arith.constant dense<0.000000e+00> : vector<32x128xf32>
    %37 = tpu.matmul %2, %36, %cst_33 {dimension_numbers = #tpu.dot_dimension_numbers<[1], [0], [0], [1], [0, 0, 1, 1], [], []>} : vector<32x32xbf16>, vector<32x128xbf16>, vector<32x128xf32> -> vector<32x128xf32>
    %38 = vector.broadcast %11 : vector<32x1xf32> to vector<32x128xf32>
    %39 = arith.addf %37, %38 : vector<32x128xf32>
    %40 = math.tanh %39 : vector<32x128xf32>
    %41 = arith.truncf %35 : vector<32x128xf32> to vector<32x128xbf16>
    %cst_34 = arith.constant dense<0.000000e+00> : vector<32x128xf32>
    %42 = tpu.matmul %4, %41, %cst_34 {dimension_numbers = #tpu.dot_dimension_numbers<[1], [0], [0], [1], [0, 0, 1, 1], [], []>} : vector<32x32xbf16>, vector<32x128xbf16>, vector<32x128xf32> -> vector<32x128xf32>
    %43 = vector.broadcast %13 : vector<32x1xf32> to vector<32x128xf32>
    %44 = arith.addf %42, %43 : vector<32x128xf32>
    %45 = arith.truncf %40 : vector<32x128xf32> to vector<32x128xbf16>
    %cst_35 = arith.constant dense<0.000000e+00> : vector<32x128xf32>
    %46 = tpu.matmul %4, %45, %cst_35 {dimension_numbers = #tpu.dot_dimension_numbers<[1], [0], [0], [1], [0, 0, 1, 1], [], []>} : vector<32x32xbf16>, vector<32x128xbf16>, vector<32x128xf32> -> vector<32x128xf32>
    %47 = vector.broadcast %13 : vector<32x1xf32> to vector<32x128xf32>
    %48 = arith.addf %46, %47 : vector<32x128xf32>
    %49 = arith.truncf %44 : vector<32x128xf32> to vector<32x128xbf16>
    %cst_36 = arith.constant dense<0.000000e+00> : vector<64x128xf32>
    %50 = tpu.matmul %5, %49, %cst_36 {dimension_numbers = #tpu.dot_dimension_numbers<[1], [0], [0], [1], [0, 0, 1, 1], [], []>} : vector<64x32xbf16>, vector<32x128xbf16>, vector<64x128xf32> -> vector<64x128xf32>
    %51 = vector.broadcast %15 : vector<64x1xf32> to vector<64x128xf32>
    %52 = arith.addf %50, %51 : vector<64x128xf32>
    %53 = math.tanh %52 : vector<64x128xf32>
    %54 = arith.truncf %48 : vector<32x128xf32> to vector<32x128xbf16>
    %cst_37 = arith.constant dense<0.000000e+00> : vector<64x128xf32>
    %55 = tpu.matmul %5, %54, %cst_37 {dimension_numbers = #tpu.dot_dimension_numbers<[1], [0], [0], [1], [0, 0, 1, 1], [], []>} : vector<64x32xbf16>, vector<32x128xbf16>, vector<64x128xf32> -> vector<64x128xf32>
    %56 = vector.broadcast %15 : vector<64x1xf32> to vector<64x128xf32>
    %57 = arith.addf %55, %56 : vector<64x128xf32>
    %58 = math.tanh %57 : vector<64x128xf32>
    %59 = arith.truncf %53 : vector<64x128xf32> to vector<64x128xbf16>
    %cst_38 = arith.constant dense<0.000000e+00> : vector<64x128xf32>
    %60 = tpu.matmul %6, %59, %cst_38 {dimension_numbers = #tpu.dot_dimension_numbers<[1], [0], [0], [1], [0, 0, 1, 1], [], []>} : vector<64x64xbf16>, vector<64x128xbf16>, vector<64x128xf32> -> vector<64x128xf32>
    %61 = vector.broadcast %17 : vector<64x1xf32> to vector<64x128xf32>
    %62 = arith.addf %60, %61 : vector<64x128xf32>
    %63 = math.tanh %62 : vector<64x128xf32>
    %64 = arith.truncf %58 : vector<64x128xf32> to vector<64x128xbf16>
    %cst_39 = arith.constant dense<0.000000e+00> : vector<64x128xf32>
    %65 = tpu.matmul %6, %64, %cst_39 {dimension_numbers = #tpu.dot_dimension_numbers<[1], [0], [0], [1], [0, 0, 1, 1], [], []>} : vector<64x64xbf16>, vector<64x128xbf16>, vector<64x128xf32> -> vector<64x128xf32>
    %66 = vector.broadcast %17 : vector<64x1xf32> to vector<64x128xf32>
    %67 = arith.addf %65, %66 : vector<64x128xf32>
    %68 = math.tanh %67 : vector<64x128xf32>
    %69 = arith.truncf %63 : vector<64x128xf32> to vector<64x128xbf16>
    %cst_40 = arith.constant dense<0.000000e+00> : vector<8x128xf32>
    %70 = tpu.matmul %7, %69, %cst_40 {dimension_numbers = #tpu.dot_dimension_numbers<[1], [0], [0], [1], [0, 0, 1, 1], [], []>} : vector<8x64xbf16>, vector<64x128xbf16>, vector<8x128xf32> -> vector<8x128xf32>
    %71 = vector.broadcast %18 : vector<8x1xf32> to vector<8x128xf32>
    %72 = arith.addf %70, %71 : vector<8x128xf32>
    %c0_41 = arith.constant 0 : index
    %c0_42 = arith.constant 0 : index
    %73 = vector.load %arg10[%c0_41, %c0_42] : memref<8x256xf32, #tpu.memory_space<vmem>>, vector<8x128xf32>
    tpu.vector_store %arg10[%c0_41, %c0_42], %72 {strides = array<i32>} : memref<8x256xf32, #tpu.memory_space<vmem>>, vector<8x128xf32>,
    %74 = arith.truncf %68 : vector<64x128xf32> to vector<64x128xbf16>
    %cst_43 = arith.constant dense<0.000000e+00> : vector<8x128xf32>
    %75 = tpu.matmul %7, %74, %cst_43 {dimension_numbers = #tpu.dot_dimension_numbers<[1], [0], [0], [1], [0, 0, 1, 1], [], []>} : vector<8x64xbf16>, vector<64x128xbf16>, vector<8x128xf32> -> vector<8x128xf32>
    %76 = vector.broadcast %18 : vector<8x1xf32> to vector<8x128xf32>
    %77 = arith.addf %75, %76 : vector<8x128xf32>
    %c0_44 = arith.constant 0 : index
    %c128_45 = arith.constant 128 : index
    %78 = vector.load %arg10[%c0_44, %c128_45] : memref<8x256xf32, #tpu.memory_space<vmem>>, vector<8x128xf32>
    tpu.vector_store %arg10[%c0_44, %c128_45], %77 {strides = array<i32>} : memref<8x256xf32, #tpu.memory_space<vmem>>, vector<8x128xf32>,
    return
  }
  func.func @transform_0(%arg0: i32) -> (i32, i32) {
    %c0_i32 = arith.constant 0 : i32
    %c0_i32_0 = arith.constant 0 : i32
    return %c0_i32, %arg0 : i32, i32
  }
  func.func @transform_1(%arg0: i32) -> (i32, i32) {
    %c0_i32 = arith.constant 0 : i32
    %c0_i32_0 = arith.constant 0 : i32
    %c0_i32_1 = arith.constant 0 : i32
    return %c0_i32, %c0_i32_0 : i32, i32
  }
  func.func @transform_2(%arg0: i32) -> (i32, i32, i32) {
    %c0_i32 = arith.constant 0 : i32
    %c0_i32_0 = arith.constant 0 : i32
    %c0_i32_1 = arith.constant 0 : i32
    %c0_i32_2 = arith.constant 0 : i32
    return %c0_i32, %c0_i32_0, %c0_i32_1 : i32, i32, i32
  }
  func.func @transform_3(%arg0: i32) -> (i32, i32) {
    %c0_i32 = arith.constant 0 : i32
    %c0_i32_0 = arith.constant 0 : i32
    %c0_i32_1 = arith.constant 0 : i32
    return %c0_i32, %c0_i32_0 : i32, i32
  }
  func.func @transform_4(%arg0: i32) -> (i32, i32) {
    %c0_i32 = arith.constant 0 : i32
    %c0_i32_0 = arith.constant 0 : i32
    %c0_i32_1 = arith.constant 0 : i32
    return %c0_i32, %c0_i32_0 : i32, i32
  }
  func.func @transform_5(%arg0: i32) -> (i32, i32) {
    %c0_i32 = arith.constant 0 : i32
    %c0_i32_0 = arith.constant 0 : i32
    %c0_i32_1 = arith.constant 0 : i32
    return %c0_i32, %c0_i32_0 : i32, i32
  }
  func.func @transform_6(%arg0: i32) -> (i32, i32, i32) {
    %c0_i32 = arith.constant 0 : i32
    %c0_i32_0 = arith.constant 0 : i32
    %c0_i32_1 = arith.constant 0 : i32
    %c0_i32_2 = arith.constant 0 : i32
    return %c0_i32, %c0_i32_0, %c0_i32_1 : i32, i32, i32
  }
  func.func @transform_7(%arg0: i32) -> (i32, i32, i32) {
    %c0_i32 = arith.constant 0 : i32
    %c0_i32_0 = arith.constant 0 : i32
    %c0_i32_1 = arith.constant 0 : i32
    %c0_i32_2 = arith.constant 0 : i32
    return %c0_i32, %c0_i32_0, %c0_i32_1 : i32, i32, i32
  }
  func.func @transform_8(%arg0: i32) -> (i32, i32) {
    %c0_i32 = arith.constant 0 : i32
    %c0_i32_0 = arith.constant 0 : i32
    %c0_i32_1 = arith.constant 0 : i32
    return %c0_i32, %c0_i32_0 : i32, i32
  }
  func.func @transform_9(%arg0: i32) -> (i32, i32) {
    %c0_i32 = arith.constant 0 : i32
    %c0_i32_0 = arith.constant 0 : i32
    return %c0_i32, %arg0 : i32, i32
  }
}

</mosaic_0001>

<llo_original>
// kernel: dnn_forward.1
$region0: #{dnn_forward.1}
  #allocation0 [shape = 'u32[]', space=smem, size = 0x4, offset = 0x4, fixed_abs, tag = 'smem constant byte address 0x4 - core index']
  #allocation1 [shape = 'u32[144,128]{1,0:T(1,128)}', space=vmem, size = 0x12000, scoped, tag = 'internal scratch']
  %s0 = inlined_call_operand.vmem [shape: f32[128,512], index: 0, kind: input, shape index: {}]
  %s1 = inlined_call_operand.vmem [shape: bf16[32,128], index: 1, kind: input, shape index: {}]
  %s2 = inlined_call_operand.vmem [shape: bf16[2,32,32], index: 2, kind: input, shape index: {}]
  %s3 = inlined_call_operand.vmem [shape: bf16[64,32], index: 3, kind: input, shape index: {}]
  %s4 = inlined_call_operand.vmem [shape: bf16[64,64], index: 4, kind: input, shape index: {}]
  %s5 = inlined_call_operand.vmem [shape: bf16[8,64], index: 5, kind: input, shape index: {}]
  %s6 = inlined_call_operand.vmem [shape: f32[3,32,1], index: 6, kind: input, shape index: {}]
  %s7 = inlined_call_operand.vmem [shape: f32[2,64,1], index: 7, kind: input, shape index: {}]
  %s8 = inlined_call_operand.vmem [shape: f32[8,1], index: 8, kind: input, shape index: {}]
  %s9 = inlined_call_operand.vmem [shape: f32[8,512], index: 9, kind: output, shape index: {}]
  %s10 = sld [smem:[#allocation0]]
  $region92: #{dnn_forward.1} parent=0
    _
  %s12 = ssub.s32 1, %s10
  %s13 = scalar_select 0, %s12, %s10
  $region1: #{dnn_forward.1} parent=0
    #allocation2 [shape = 'u8[262144]{0}', space=vmem, size = 0x40000, scoped, tag = 'input window, operand 0']
    loop: start=0, step=1, limit=4
    $region2: #{dnn_forward.1} parent=1 // loop_pre_header
      _
    $region3: #{dnn_forward.1} parent=1 // loop_header
      %s15 = sphi 0, %s19
      %p16 = scmp.ge.s32.totalorder %s15, 4
      %s25 = sphi 0, %s27
      %s28 = sphi 0, %s25
      %s29 = sphi 0, %s28
      %s45 = sphi 0, %s29
      %s49 = sphi 0, %s49
      %s51 = sphi 0, %s49
      %s52 = sphi 0, %s51
      %s66 = sphi 0, %s52
      %s70 = sphi 0, %s70
      %s72 = sphi 0, %s70
      %s73 = sphi 0, %s72
      %s87 = sphi 0, %s73
      %s91 = sphi 0, %s91
      %s93 = sphi 0, %s91
      %s94 = sphi 0, %s93
      %s108 = sphi 0, %s94
      %s112 = sphi 0, %s112
      %s114 = sphi 0, %s112
      %s115 = sphi 0, %s114
      %s129 = sphi 0, %s115
      %s133 = sphi 0, %s133
      %s135 = sphi 0, %s133
      %s136 = sphi 0, %s135
      %s150 = sphi 0, %s136
      %s154 = sphi 0, %s154
      %s156 = sphi 0, %s154
      %s157 = sphi 0, %s156
      %s171 = sphi 0, %s157
      %s175 = sphi 0, %s175
      %s177 = sphi 0, %s175
      %s178 = sphi 0, %s177
      %s192 = sphi 0, %s178
      %s196 = sphi 0, %s196
      %s198 = sphi 0, %s196
      %s199 = sphi 0, %s198
      %s213 = sphi 0, %s199
      %s219 = sphi 0, %s221
      %s222 = sphi 0, %s219
      %s223 = sphi 0, %s222
      %s239 = sphi 0, %s223
    $region4: #{dnn_forward.1} parent=1 // loop_header_branch
      %18 = sbr.rel (%p16) target = $region8
    $region5: #{dnn_forward.1} parent=1 // loop_body
      %s20 = ssub.s32 %s15, 1
      %s21 = ssub.s32 %s15, 2
      %s22 = sadd.s32 %s15, 1
      %s23 = ssub.s32 %s15, %s22
      %p24 = scmp.eq.s32.totalorder %s23, 0
      %s26 = sadd.s32 %s25, 1
      %s27 = scalar_select %p24, %s25, %s26
      %p30 = pneg %p24
      %p31 = scmp.eq.s32.totalorder %s15, 1
      %p32 = por %p30, %p31
      %p33 = scmp.ne.s32.totalorder %s25, %s28
      %p34 = scmp.eq.s32.totalorder %s15, 0
      %p35 = por %p33, %p34
      %p36 = scmp.ne.s32.totalorder %s25, %s28
      %p37 = scmp.eq.s32.totalorder %s20, 1
      %p38 = por %p36, %p37
      %p39 = scmp.ne.s32.totalorder %s28, %s29
      %p40 = scmp.eq.s32.totalorder %s20, 0
      %p41 = por %p39, %p40
      %p42 = scmp.ne.s32.totalorder %s28, %s29
      %p43 = scmp.eq.s32.totalorder %s21, 1
      %p44 = por %p42, %p43
      %p46 = scmp.ne.s32.totalorder %s29, %s45
      %p47 = scmp.eq.s32.totalorder %s21, 0
      %p48 = por %p46, %p47
      %s50 = sadd.s32 %s49, 1
      %p53 = scmp.eq.s32.totalorder %s15, 1
      %p54 = scmp.ne.s32.totalorder %s49, %s51
      %p55 = scmp.eq.s32.totalorder %s15, 0
      %p56 = por %p54, %p55
      %p57 = scmp.ne.s32.totalorder %s49, %s51
      %p58 = scmp.eq.s32.totalorder %s20, 1
      %p59 = por %p57, %p58
      %p60 = scmp.ne.s32.totalorder %s51, %s52
      %p61 = scmp.eq.s32.totalorder %s20, 0
      %p62 = por %p60, %p61
      %p63 = scmp.ne.s32.totalorder %s51, %s52
      %p64 = scmp.eq.s32.totalorder %s21, 1
      %p65 = por %p63, %p64
      %p67 = scmp.ne.s32.totalorder %s52, %s66
      %p68 = scmp.eq.s32.totalorder %s21, 0
      %p69 = por %p67, %p68
      %s71 = sadd.s32 %s70, 1
      %p74 = scmp.eq.s32.totalorder %s15, 1
      %p75 = scmp.ne.s32.totalorder %s70, %s72
      %p76 = scmp.eq.s32.totalorder %s15, 0
      %p77 = por %p75, %p76
      %p78 = scmp.ne.s32.totalorder %s70, %s72
      %p79 = scmp.eq.s32.totalorder %s20, 1
      %p80 = por %p78, %p79
      %p81 = scmp.ne.s32.totalorder %s72, %s73
      %p82 = scmp.eq.s32.totalorder %s20, 0
      %p83 = por %p81, %p82
      %p84 = scmp.ne.s32.totalorder %s72, %s73
      %p85 = scmp.eq.s32.totalorder %s21, 1
      %p86 = por %p84, %p85
      %p88 = scmp.ne.s32.totalorder %s73, %s87
      %p89 = scmp.eq.s32.totalorder %s21, 0
      %p90 = por %p88, %p89
      %s92 = sadd.s32 %s91, 1
      %p95 = scmp.eq.s32.totalorder %s15, 1
      %p96 = scmp.ne.s32.totalorder %s91, %s93
      %p97 = scmp.eq.s32.totalorder %s15, 0
      %p98 = por %p96, %p97
      %p99 = scmp.ne.s32.totalorder %s91, %s93
      %p100 = scmp.eq.s32.totalorder %s20, 1
      %p101 = por %p99, %p100
      %p102 = scmp.ne.s32.totalorder %s93, %s94
      %p103 = scmp.eq.s32.totalorder %s20, 0
      %p104 = por %p102, %p103
      %p105 = scmp.ne.s32.totalorder %s93, %s94
      %p106 = scmp.eq.s32.totalorder %s21, 1
      %p107 = por %p105, %p106
      %p109 = scmp.ne.s32.totalorder %s94, %s108
      %p110 = scmp.eq.s32.totalorder %s21, 0
      %p111 = por %p109, %p110
      %s113 = sadd.s32 %s112, 1
      %p116 = scmp.eq.s32.totalorder %s15, 1
      %p117 = scmp.ne.s32.totalorder %s112, %s114
      %p118 = scmp.eq.s32.totalorder %s15, 0
      %p119 = por %p117, %p118
      %p120 = scmp.ne.s32.totalorder %s112, %s114
      %p121 = scmp.eq.s32.totalorder %s20, 1
      %p122 = por %p120, %p121
      %p123 = scmp.ne.s32.totalorder %s114, %s115
      %p124 = scmp.eq.s32.totalorder %s20, 0
      %p125 = por %p123, %p124
      %p126 = scmp.ne.s32.totalorder %s114, %s115
      %p127 = scmp.eq.s32.totalorder %s21, 1
      %p128 = por %p126, %p127
      %p130 = scmp.ne.s32.totalorder %s115, %s129
      %p131 = scmp.eq.s32.totalorder %s21, 0
      %p132 = por %p130, %p131
      %s134 = sadd.s32 %s133, 1
      %p137 = scmp.eq.s32.totalorder %s15, 1
      %p138 = scmp.ne.s32.totalorder %s133, %s135
      %p139 = scmp.eq.s32.totalorder %s15, 0
      %p140 = por %p138, %p139
      %p141 = scmp.ne.s32.totalorder %s133, %s135
      %p142 = scmp.eq.s32.totalorder %s20, 1
      %p143 = por %p141, %p142
      %p144 = scmp.ne.s32.totalorder %s135, %s136
      %p145 = scmp.eq.s32.totalorder %s20, 0
      %p146 = por %p144, %p145
      %p147 = scmp.ne.s32.totalorder %s135, %s136
      %p148 = scmp.eq.s32.totalorder %s21, 1
      %p149 = por %p147, %p148
      %p151 = scmp.ne.s32.totalorder %s136, %s150
      %p152 = scmp.eq.s32.totalorder %s21, 0
      %p153 = por %p151, %p152
      %s155 = sadd.s32 %s154, 1
      %p158 = scmp.eq.s32.totalorder %s15, 1
      %p159 = scmp.ne.s32.totalorder %s154, %s156
      %p160 = scmp.eq.s32.totalorder %s15, 0
      %p161 = por %p159, %p160
      %p162 = scmp.ne.s32.totalorder %s154, %s156
      %p163 = scmp.eq.s32.totalorder %s20, 1
      %p164 = por %p162, %p163
      %p165 = scmp.ne.s32.totalorder %s156, %s157
      %p166 = scmp.eq.s32.totalorder %s20, 0
      %p167 = por %p165, %p166
      %p168 = scmp.ne.s32.totalorder %s156, %s157
      %p169 = scmp.eq.s32.totalorder %s21, 1
      %p170 = por %p168, %p169
      %p172 = scmp.ne.s32.totalorder %s157, %s171
      %p173 = scmp.eq.s32.totalorder %s21, 0
      %p174 = por %p172, %p173
      %s176 = sadd.s32 %s175, 1
      %p179 = scmp.eq.s32.totalorder %s15, 1
      %p180 = scmp.ne.s32.totalorder %s175, %s177
      %p181 = scmp.eq.s32.totalorder %s15, 0
      %p182 = por %p180, %p181
      %p183 = scmp.ne.s32.totalorder %s175, %s177
      %p184 = scmp.eq.s32.totalorder %s20, 1
      %p185 = por %p183, %p184
      %p186 = scmp.ne.s32.totalorder %s177, %s178
      %p187 = scmp.eq.s32.totalorder %s20, 0
      %p188 = por %p186, %p187
      %p189 = scmp.ne.s32.totalorder %s177, %s178
      %p190 = scmp.eq.s32.totalorder %s21, 1
      %p191 = por %p189, %p190
      %p193 = scmp.ne.s32.totalorder %s178, %s192
      %p194 = scmp.eq.s32.totalorder %s21, 0
      %p195 = por %p193, %p194
      %s197 = sadd.s32 %s196, 1
      %p200 = scmp.eq.s32.totalorder %s15, 1
      %p201 = scmp.ne.s32.totalorder %s196, %s198
      %p202 = scmp.eq.s32.totalorder %s15, 0
      %p203 = por %p201, %p202
      %p204 = scmp.ne.s32.totalorder %s196, %s198
      %p205 = scmp.eq.s32.totalorder %s20, 1
      %p206 = por %p204, %p205
      %p207 = scmp.ne.s32.totalorder %s198, %s199
      %p208 = scmp.eq.s32.totalorder %s20, 0
      %p209 = por %p207, %p208
      %p210 = scmp.ne.s32.totalorder %s198, %s199
      %p211 = scmp.eq.s32.totalorder %s21, 1
      %p212 = por %p210, %p211
      %p214 = scmp.ne.s32.totalorder %s199, %s213
      %p215 = scmp.eq.s32.totalorder %s21, 0
      %p216 = por %p214, %p215
      %s217 = ssub.s32 %s15, %s22
      %p218 = scmp.eq.s32.totalorder %s217, 0
      %s220 = sadd.s32 %s219, 1
      %s221 = scalar_select %p218, %s219, %s220
      %p224 = pneg %p218
      %p225 = scmp.eq.s32.totalorder %s15, 1
      %p226 = por %p224, %p225
      %p227 = scmp.ne.s32.totalorder %s219, %s222
      %p228 = scmp.eq.s32.totalorder %s15, 0
      %p229 = por %p227, %p228
      %p230 = scmp.ne.s32.totalorder %s219, %s222
      %p231 = scmp.eq.s32.totalorder %s20, 1
      %p232 = por %p230, %p231
      %p233 = scmp.ne.s32.totalorder %s222, %s223
      %p234 = scmp.eq.s32.totalorder %s20, 0
      %p235 = por %p233, %p234
      %p236 = scmp.ne.s32.totalorder %s222, %s223
      %p237 = scmp.eq.s32.totalorder %s21, 1
      %p238 = por %p236, %p237
      %p240 = scmp.ne.s32.totalorder %s223, %s239
      %p241 = scmp.eq.s32.totalorder %s21, 0
      %p242 = por %p240, %p241
      %p243 = scmp.le.s32.totalorder 1, %s15
      %p244 = scmp.lt.s32.totalorder %s15, 3
      %p245 = pnand %p243, %p244
      %p246 = pneg %p245
      // Predicated region
      $region9: #{dnn_forward.1} parent=5 // pred_check
        _
      $region10: #{dnn_forward.1} parent=5 // pred_check_branch
        %248 = sbr.rel (%p245) target = $region12
      $region11: #{dnn_forward.1} parent=5 // pred_region
        %s249 = ssub.s32 %s15, 1
        // Predicated region
        $region13: #{dnn_forward.1} parent=11 // pred_check
          %p250 = pneg %p62
        $region14: #{dnn_forward.1} parent=11 // pred_check_branch
          %252 = sbr.rel (%p250) target = $region16
        $region15: #{dnn_forward.1} parent=11 // pred_region
          _
        $region16: #{dnn_forward.1} parent=11 // pred_fallthru
          _
        // Predicated region
        $region17: #{dnn_forward.1} parent=11 // pred_check
          %p253 = pneg %p83
        $region18: #{dnn_forward.1} parent=11 // pred_check_branch
          %255 = sbr.rel (%p253) target = $region20
        $region19: #{dnn_forward.1} parent=11 // pred_region
          _
        $region20: #{dnn_forward.1} parent=11 // pred_fallthru
          _
        // Predicated region
        $region21: #{dnn_forward.1} parent=11 // pred_check
          %p256 = pneg %p104
        $region22: #{dnn_forward.1} parent=11 // pred_check_branch
          %258 = sbr.rel (%p256) target = $region24
        $region23: #{dnn_forward.1} parent=11 // pred_region
          _
        $region24: #{dnn_forward.1} parent=11 // pred_fallthru
          _
        // Predicated region
        $region25: #{dnn_forward.1} parent=11 // pred_check
          %p259 = pneg %p125
        $region26: #{dnn_forward.1} parent=11 // pred_check_branch
          %261 = sbr.rel (%p259) target = $region28
        $region27: #{dnn_forward.1} parent=11 // pred_region
          _
        $region28: #{dnn_forward.1} parent=11 // pred_fallthru
          _
        // Predicated region
        $region29: #{dnn_forward.1} parent=11 // pred_check
          %p262 = pneg %p146
        $region30: #{dnn_forward.1} parent=11 // pred_check_branch
          %264 = sbr.rel (%p262) target = $region32
        $region31: #{dnn_forward.1} parent=11 // pred_region
          _
        $region32: #{dnn_forward.1} parent=11 // pred_fallthru
          _
        // Predicated region
        $region33: #{dnn_forward.1} parent=11 // pred_check
          %p265 = pneg %p167
        $region34: #{dnn_forward.1} parent=11 // pred_check_branch
          %267 = sbr.rel (%p265) target = $region36
        $region35: #{dnn_forward.1} parent=11 // pred_region
          _
        $region36: #{dnn_forward.1} parent=11 // pred_fallthru
          _
        // Predicated region
        $region37: #{dnn_forward.1} parent=11 // pred_check
          %p268 = pneg %p188
        $region38: #{dnn_forward.1} parent=11 // pred_check_branch
          %270 = sbr.rel (%p268) target = $region40
        $region39: #{dnn_forward.1} parent=11 // pred_region
          _
        $region40: #{dnn_forward.1} parent=11 // pred_fallthru
          _
        // Predicated region
        $region41: #{dnn_forward.1} parent=11 // pred_check
          %p271 = pneg %p209
        $region42: #{dnn_forward.1} parent=11 // pred_check_branch
          %273 = sbr.rel (%p271) target = $region44
        $region43: #{dnn_forward.1} parent=11 // pred_region
          _
        $region44: #{dnn_forward.1} parent=11 // pred_fallthru
          _
      $region12: #{dnn_forward.1} parent=5 // pred_fallthru
        _
      %p274 = scmp.lt.s32.totalorder %s15, 2
      // Predicated region
      $region45: #{dnn_forward.1} parent=5 // pred_check
        %p275 = pneg %p274
      $region46: #{dnn_forward.1} parent=5 // pred_check_branch
        %277 = sbr.rel (%p275) target = $region48
      $region47: #{dnn_forward.1} parent=5 // pred_region
        // Predicated region
        $region49: #{dnn_forward.1} parent=47 // pred_check
          %p278 = pneg %p35
        $region50: #{dnn_forward.1} parent=47 // pred_check_branch
          %280 = sbr.rel (%p278) target = $region52
        $region51: #{dnn_forward.1} parent=47 // pred_region
          %s281 = sand.u32 %s25, 1
          %s282 = sand.u32 %s25, 1
          %s283 = smul.addr %s282, 256
          %s284 = scalar_lea.vmem [#allocation2], %s283
          %s285 = smul.u32 2, %s15
          %s286 = smul.addr %s285, 8
          %s287 = scalar_lea.vmem %s0, %s286
          // Predicated region
          $region53: #{dnn_forward.1} parent=51 // pred_check
            _
          $region54: #{dnn_forward.1} parent=51 // pred_check_branch
            %289 = sbr.rel (0) target = $region56
          $region55: #{dnn_forward.1} parent=51 // pred_region
            // Predicated region
            $region57: #{dnn_forward.1} parent=55 // pred_check
              _
            $region58: #{dnn_forward.1} parent=55 // pred_check_branch
              %291 = sbr.rel (0) target = $region60
            $region59: #{dnn_forward.1} parent=55 // pred_region
              loop: start=0, step=1, limit=1
              $region61: #{dnn_forward.1} parent=59 // loop_pre_header
                _
              $region62: #{dnn_forward.1} parent=59 // loop_header
                %s293 = sphi 0, %s297
                %p294 = scmp.ge.s32.totalorder %s293, 1
                %s298 = sphi %s287, %s287
                %s299 = sphi %s284, %s284
              $region63: #{dnn_forward.1} parent=59 // loop_header_branch
                %296 = sbr.rel (%p294) target = $region67
              $region64: #{dnn_forward.1} parent=59 // loop_body
                %v300 = vld [vmem:[%s298] sm:$0xff]
                %301 = vst [vmem:[%s299] sm:$0xff] %v300
                %v302 = vld [vmem:[%s298 + $0x8] sm:$0xff]
                %303 = vst [vmem:[%s299 + $0x8] sm:$0xff] %v302
                %v304 = vld [vmem:[%s298 + $0x20] sm:$0xff]
                %305 = vst [vmem:[%s299 + $0x10] sm:$0xff] %v304
                %v306 = vld [vmem:[%s298 + $0x28] sm:$0xff]
                %307 = vst [vmem:[%s299 + $0x18] sm:$0xff] %v306
                %v308 = vld [vmem:[%s298 + $0x40] sm:$0xff]
                %309 = vst [vmem:[%s299 + $0x20] sm:$0xff] %v308
                %v310 = vld [vmem:[%s298 + $0x48] sm:$0xff]
                %311 = vst [vmem:[%s299 + $0x28] sm:$0xff] %v310
                %v312 = vld [vmem:[%s298 + $0x60] sm:$0xff]
                %313 = vst [vmem:[%s299 + $0x30] sm:$0xff] %v312
                %v314 = vld [vmem:[%s298 + $0x68] sm:$0xff]
                %315 = vst [vmem:[%s299 + $0x38] sm:$0xff] %v314
                %v316 = vld [vmem:[%s298 + $0x80] sm:$0xff]
                %317 = vst [vmem:[%s299 + $0x40] sm:$0xff] %v316
                %v318 = vld [vmem:[%s298 + $0x88] sm:$0xff]
                %319 = vst [vmem:[%s299 + $0x48] sm:$0xff] %v318
                %v320 = vld [vmem:[%s298 + $0xa0] sm:$0xff]
                %321 = vst [vmem:[%s299 + $0x50] sm:$0xff] %v320
                %v322 = vld [vmem:[%s298 + $0xa8] sm:$0xff]
                %323 = vst [vmem:[%s299 + $0x58] sm:$0xff] %v322
                %v324 = vld [vmem:[%s298 + $0xc0] sm:$0xff]
                %325 = vst [vmem:[%s299 + $0x60] sm:$0xff] %v324
                %v326 = vld [vmem:[%s298 + $0xc8] sm:$0xff]
                %327 = vst [vmem:[%s299 + $0x68] sm:$0xff] %v326
                %v328 = vld [vmem:[%s298 + $0xe0] sm:$0xff]
                %329 = vst [vmem:[%s299 + $0x70] sm:$0xff] %v328
                %v330 = vld [vmem:[%s298 + $0xe8] sm:$0xff]
                %331 = vst [vmem:[%s299 + $0x78] sm:$0xff] %v330
                %v332 = vld [vmem:[%s298 + $0x100] sm:$0xff]
                %333 = vst [vmem:[%s299 + $0x80] sm:$0xff] %v332
                %v334 = vld [vmem:[%s298 + $0x108] sm:$0xff]
                %335 = vst [vmem:[%s299 + $0x88] sm:$0xff] %v334
                %v336 = vld [vmem:[%s298 + $0x120] sm:$0xff]
                %337 = vst [vmem:[%s299 + $0x90] sm:$0xff] %v336
                %v338 = vld [vmem:[%s298 + $0x128] sm:$0xff]
                %339 = vst [vmem:[%s299 + $0x98] sm:$0xff] %v338
                %v340 = vld [vmem:[%s298 + $0x140] sm:$0xff]
                %341 = vst [vmem:[%s299 + $0xa0] sm:$0xff] %v340
                %v342 = vld [vmem:[%s298 + $0x148] sm:$0xff]
                %343 = vst [vmem:[%s299 + $0xa8] sm:$0xff] %v342
                %v344 = vld [vmem:[%s298 + $0x160] sm:$0xff]
                %345 = vst [vmem:[%s299 + $0xb0] sm:$0xff] %v344
                %v346 = vld [vmem:[%s298 + $0x168] sm:$0xff]
                %347 = vst [vmem:[%s299 + $0xb8] sm:$0xff] %v346
                %v348 = vld [vmem:[%s298 + $0x180] sm:$0xff]
                %349 = vst [vmem:[%s299 + $0xc0] sm:$0xff] %v348
                %v350 = vld [vmem:[%s298 + $0x188] sm:$0xff]
                %351 = vst [vmem:[%s299 + $0xc8] sm:$0xff] %v350
                %v352 = vld [vmem:[%s298 + $0x1a0] sm:$0xff]
                %353 = vst [vmem:[%s299 + $0xd0] sm:$0xff] %v352
                %v354 = vld [vmem:[%s298 + $0x1a8] sm:$0xff]
                %355 = vst [vmem:[%s299 + $0xd8] sm:$0xff] %v354
                %v356 = vld [vmem:[%s298 + $0x1c0] sm:$0xff]
                %357 = vst [vmem:[%s299 + $0xe0] sm:$0xff] %v356
                %v358 = vld [vmem:[%s298 + $0x1c8] sm:$0xff]
                %359 = vst [vmem:[%s299 + $0xe8] sm:$0xff] %v358
                %v360 = vld [vmem:[%s298 + $0x1e0] sm:$0xff]
                %361 = vst [vmem:[%s299 + $0xf0] sm:$0xff] %v360
                %v362 = vld [vmem:[%s298 + $0x1e8] sm:$0xff]
                %363 = vst [vmem:[%s299 + $0xf8] sm:$0xff] %v362
              $region65: #{dnn_forward.1} parent=59 // loop_footer
                %s297 = sadd.s32 1, %s293
              $region66: #{dnn_forward.1} parent=59 // loop_footer_branch
                %292 = sbr.rel target = $region62
              $region67: #{dnn_forward.1} parent=59 // loop_exit
                _
            $region60: #{dnn_forward.1} parent=55 // pred_fallthru
              _
            // Predicated region
            $region68: #{dnn_forward.1} parent=55 // pred_check
              _
            $region69: #{dnn_forward.1} parent=55 // pred_check_branch
              %365 = sbr.rel target = $region71
            $region70: #{dnn_forward.1} parent=55 // pred_region
              _
            $region71: #{dnn_forward.1} parent=55 // pred_fallthru
              _
          $region56: #{dnn_forward.1} parent=51 // pred_fallthru
            _
          %366 = vnop
        $region52: #{dnn_forward.1} parent=47 // pred_fallthru
          _
      $region48: #{dnn_forward.1} parent=5 // pred_fallthru
        _
      %p367 = scmp.le.s32.totalorder 1, %s15
      %p368 = scmp.lt.s32.totalorder %s15, 3
      %p369 = pnand %p367, %p368
      %p370 = pneg %p369
      // Predicated region
      $region72: #{dnn_forward.1} parent=5 // pred_check
        _
      $region73: #{dnn_forward.1} parent=5 // pred_check_branch
        %372 = sbr.rel (%p369) target = $region75
      $region74: #{dnn_forward.1} parent=5 // pred_region
        %s373 = ssub.s32 %s15, 1
        %s374 = sand.u32 %s28, 1
        %s375 = sand.u32 %s28, 1
        %s376 = smul.addr %s375, 256
        %s377 = scalar_lea.vmem [#allocation2], %s376
        // Predicated region
        $region76: #{dnn_forward.1} parent=74 // pred_check
          %p378 = pneg %p41
        $region77: #{dnn_forward.1} parent=74 // pred_check_branch
          %380 = sbr.rel (%p378) target = $region79
        $region78: #{dnn_forward.1} parent=74 // pred_region
          _
        $region79: #{dnn_forward.1} parent=74 // pred_fallthru
          _
        %s381 = sand.u32 %s28, 1
        %s382 = sand.u32 %s28, 1
        %s383 = smul.addr %s382, 256
        %s384 = scalar_lea.vmem [#allocation2], %s383
        %p385 = pneg %p41
        %p386 = pneg %p38
        %p387 = pneg %p62
        %p388 = pneg %p59
        %p389 = pneg %p83
        %p390 = pneg %p80
        %p391 = pneg %p104
        %p392 = pneg %p101
        %p393 = pneg %p125
        %p394 = pneg %p122
        %p395 = pneg %p146
        %p396 = pneg %p143
        %p397 = pneg %p167
        %p398 = pneg %p164
        %p399 = pneg %p188
        %p400 = pneg %p185
        %p401 = pneg %p209
        %p402 = pneg %p206
        %p403 = pneg %p235
        %p404 = pneg %p232
        %s405 = smul.u32 2, %s20
        %p406 = scmp.lt.s32.totalorder %s405, 3
        %s407 = scalar_select %p406, %s405, 3
        %s408 = smul.addr %s407, 8
        %s409 = scalar_lea.vmem %s9, %s408
        %s410 = smul.u32 2, %s20
        %s411 = smul.u32 2, %s20
        %p412 = scmp.lt.s32.totalorder %s411, 3
        %s413 = scalar_select %p412, %s411, 3
        %s414 = smul.addr %s413, 8
        %s415 = scalar_lea.vmem %s9, %s414
        %s416 = smul.u32 2, %s20
        %v418 = vld [vmem:[%s1] sm:$0xf]
        %v419 = vld [vmem:[%s1 + $0x4] sm:$0xf]
        %v420 = vld [vmem:[%s1 + $0x8] sm:$0xf]
        %v421 = vld [vmem:[%s1 + $0xc] sm:$0xf]
        %v422 = vld [vmem:[%s2] sm:$0xf]
        %v423 = vld [vmem:[%s2 + $0x4] sm:$0xf]
        %v424 = vld [vmem:[%s2 + $0x8] sm:$0xf]
        %v425 = vld [vmem:[%s2 + $0xc] sm:$0xf]
        %s426 = scalar_lea.vmem %s2, 16
        %v427 = vld [vmem:[%s426] sm:$0xf]
        %v428 = vld [vmem:[%s426 + $0x4] sm:$0xf]
        %v429 = vld [vmem:[%s426 + $0x8] sm:$0xf]
        %v430 = vld [vmem:[%s426 + $0xc] sm:$0xf]
        %v431 = vld [vmem:[%s3] sm:$0xf]
        %v432 = vld [vmem:[%s3 + $0x4] sm:$0xf]
        %v433 = vld [vmem:[%s3 + $0x8] sm:$0xf]
        %v434 = vld [vmem:[%s3 + $0xc] sm:$0xf]
        %v435 = vld [vmem:[%s3 + $0x10] sm:$0xf]
        %v436 = vld [vmem:[%s3 + $0x14] sm:$0xf]
        %v437 = vld [vmem:[%s3 + $0x18] sm:$0xf]
        %v438 = vld [vmem:[%s3 + $0x1c] sm:$0xf]
        %v439 = vld [vmem:[%s4] sm:$0xf]
        %v440 = vld [vmem:[%s4 + $0x4] sm:$0xf]
        %v441 = vld [vmem:[%s4 + $0x8] sm:$0xf]
        %v442 = vld [vmem:[%s4 + $0xc] sm:$0xf]
        %v443 = vld [vmem:[%s4 + $0x10] sm:$0xf]
        %v444 = vld [vmem:[%s4 + $0x14] sm:$0xf]
        %v445 = vld [vmem:[%s4 + $0x18] sm:$0xf]
        %v446 = vld [vmem:[%s4 + $0x1c] sm:$0xf]
        %v447 = vld [vmem:[%s5] sm:$0xf]
        %v448 = vld [vmem:[%s6] sm:$0xff]
        %v449 = vld [vmem:[%s6 + $0x8] sm:$0xff]
        %v450 = vld [vmem:[%s6 + $0x10] sm:$0xff]
        %v451 = vld [vmem:[%s6 + $0x18] sm:$0xff]
        %s452 = scalar_lea.vmem %s6, 32
        %v453 = vld [vmem:[%s452] sm:$0xff]
        %v454 = vld [vmem:[%s452 + $0x8] sm:$0xff]
        %v455 = vld [vmem:[%s452 + $0x10] sm:$0xff]
        %v456 = vld [vmem:[%s452 + $0x18] sm:$0xff]
        %s457 = scalar_lea.vmem %s6, 64
        %v458 = vld [vmem:[%s457] sm:$0xff]
        %v459 = vld [vmem:[%s457 + $0x8] sm:$0xff]
        %v460 = vld [vmem:[%s457 + $0x10] sm:$0xff]
        %v461 = vld [vmem:[%s457 + $0x18] sm:$0xff]
        %v462 = vld [vmem:[%s7] sm:$0xff]
        %v463 = vld [vmem:[%s7 + $0x8] sm:$0xff]
        %v464 = vld [vmem:[%s7 + $0x10] sm:$0xff]
        %v465 = vld [vmem:[%s7 + $0x18] sm:$0xff]
        %v466 = vld [vmem:[%s7 + $0x20] sm:$0xff]
        %v467 = vld [vmem:[%s7 + $0x28] sm:$0xff]
        %v468 = vld [vmem:[%s7 + $0x30] sm:$0xff]
        %v469 = vld [vmem:[%s7 + $0x38] sm:$0xff]
        %s470 = scalar_lea.vmem %s7, 64
        %v471 = vld [vmem:[%s470] sm:$0xff]
        %v472 = vld [vmem:[%s470 + $0x8] sm:$0xff]
        %v473 = vld [vmem:[%s470 + $0x10] sm:$0xff]
        %v474 = vld [vmem:[%s470 + $0x18] sm:$0xff]
        %v475 = vld [vmem:[%s470 + $0x20] sm:$0xff]
        %v476 = vld [vmem:[%s470 + $0x28] sm:$0xff]
        %v477 = vld [vmem:[%s470 + $0x30] sm:$0xff]
        %v478 = vld [vmem:[%s470 + $0x38] sm:$0xff]
        %v479 = vld [vmem:[%s8] sm:$0xff]
        %v480 = vld [vmem:[%s377] sm:$0xff]
        %v481 = vld [vmem:[%s377 + $0x10] sm:$0xff]
        %v482 = vld [vmem:[%s377 + $0x20] sm:$0xff]
        %v483 = vld [vmem:[%s377 + $0x30] sm:$0xff]
        %v484 = vld [vmem:[%s377 + $0x40] sm:$0xff]
        %v485 = vld [vmem:[%s377 + $0x50] sm:$0xff]
        %v486 = vld [vmem:[%s377 + $0x60] sm:$0xff]
        %v487 = vld [vmem:[%s377 + $0x70] sm:$0xff]
        %v488 = vld [vmem:[%s377 + $0x80] sm:$0xff]
        %v489 = vld [vmem:[%s377 + $0x90] sm:$0xff]
        %v490 = vld [vmem:[%s377 + $0xa0] sm:$0xff]
        %v491 = vld [vmem:[%s377 + $0xb0] sm:$0xff]
        %v492 = vld [vmem:[%s377 + $0xc0] sm:$0xff]
        %v493 = vld [vmem:[%s377 + $0xd0] sm:$0xff]
        %v494 = vld [vmem:[%s377 + $0xe0] sm:$0xff]
        %v495 = vld [vmem:[%s377 + $0xf0] sm:$0xff]
        %v496 = vld [vmem:[%s377 + $0x8] sm:$0xff]
        %v497 = vld [vmem:[%s377 + $0x18] sm:$0xff]
        %v498 = vld [vmem:[%s377 + $0x28] sm:$0xff]
        %v499 = vld [vmem:[%s377 + $0x38] sm:$0xff]
        %v500 = vld [vmem:[%s377 + $0x48] sm:$0xff]
        %v501 = vld [vmem:[%s377 + $0x58] sm:$0xff]
        %v502 = vld [vmem:[%s377 + $0x68] sm:$0xff]
        %v503 = vld [vmem:[%s377 + $0x78] sm:$0xff]
        %v504 = vld [vmem:[%s377 + $0x88] sm:$0xff]
        %v505 = vld [vmem:[%s377 + $0x98] sm:$0xff]
        %v506 = vld [vmem:[%s377 + $0xa8] sm:$0xff]
        %v507 = vld [vmem:[%s377 + $0xb8] sm:$0xff]
        %v508 = vld [vmem:[%s377 + $0xc8] sm:$0xff]
        %v509 = vld [vmem:[%s377 + $0xd8] sm:$0xff]
        %v510 = vld [vmem:[%s377 + $0xe8] sm:$0xff]
        %v511 = vld [vmem:[%s377 + $0xf8] sm:$0xff]
        %v512 = vpack.c.bf16 %v481, %v480
        %v513 = vpack.c.bf16 %v483, %v482
        %v514 = vpack.c.bf16 %v485, %v484
        %v515 = vpack.c.bf16 %v487, %v486
        %v516 = vpack.c.bf16 %v489, %v488
        %v517 = vpack.c.bf16 %v491, %v490
        %v518 = vpack.c.bf16 %v493, %v492
        %v519 = vpack.c.bf16 %v495, %v494
        %521 = vset.pattern.permute.xlu0 0
        %522 = vperm.xlu0 %521, %v448
        %v523 = vpop.permute.xlu0 %522
        %526 = vset.pattern.permute.xlu0 0
        %527 = vperm.xlu0 %526, %v449
        %v528 = vpop.permute.xlu0 %527
        %531 = vset.pattern.permute.xlu0 0
        %532 = vperm.xlu0 %531, %v450
        %v533 = vpop.permute.xlu0 %532
        %536 = vset.pattern.permute.xlu0 0
        %537 = vperm.xlu0 %536, %v451
        %v538 = vpop.permute.xlu0 %537
        %v544 = vunpack.c.l.b16 %v418
        %v545 = vunpack.c.l.b16 %v419
        %v546 = vunpack.c.l.b16 %v420
        %v547 = vunpack.c.l.b16 %v421
        %v548 = vpack.c.b16 %v545, %v544
        %v549 = vpack.c.b16 %v547, %v546
        %552 = vmatprep.subr.bf16.mxu0 0
        %553 = vmatpush1.bf16.msra.mxu0 %v512
        %554 = vmatprep.subr.bf16.mxu0 0
        %555 = vmatpush1.bf16.msra.mxu0 %v513
        %556 = vmatprep.subr.bf16.mxu0 0
        %557 = vmatpush1.bf16.msra.mxu0 %v514
        %558 = vmatprep.subr.bf16.mxu0 0
        %559 = vmatpush1.bf16.msra.mxu0 %v515
        %560 = vmatprep.subr.bf16.mxu0 0
        %561 = vmatpush1.bf16.msra.mxu0 %v516
        %562 = vmatprep.subr.bf16.mxu0 0
        %563 = vmatpush1.bf16.msra.mxu0 %v517
        %564 = vmatprep.subr.bf16.mxu0 0
        %565 = vmatpush1.bf16.msra.mxu0 %v518
        %566 = vmatprep.subr.bf16.mxu0 0
        %567 = vmatpush1.bf16.msra.mxu0 %v519
        %568 = vmatprep.subr.bf16.mxu0 0
        %569 = vmatpush1.bf16.msra.mxu0 0
        %570 = vmatprep.subr.bf16.mxu0 0
        %571 = vmatpush1.bf16.msra.mxu0 0
        %572 = vmatprep.subr.bf16.mxu0 0
        %573 = vmatpush1.bf16.msra.mxu0 0
        %574 = vmatprep.subr.bf16.mxu0 0
        %575 = vmatpush1.bf16.msra.mxu0 0
        %576 = vmatprep.subr.bf16.mxu0 0
        %577 = vmatpush1.bf16.msra.mxu0 0
        %578 = vmatprep.subr.bf16.mxu0 0
        %579 = vmatpush1.bf16.msra.mxu0 0
        %580 = vmatprep.subr.bf16.mxu0 0
        %581 = vmatpush1.bf16.msra.mxu0 0
        %582 = vmatprep.subr.bf16.mxu0 0
        %583 = vmatpush1.bf16.msra.mxu0 0
        %584 = vmatprep.mubr.bf16.mxu0 0
        %585 = vmatmul.mubr.bf16.gmra.mrb[0].mxu0 %v548
        %v586 = vpop.f32.mrb[0].mxu0
        %v587 = vadd.f32 %v523, %v586
        %v588 = vpop.f32.mrb[0].mxu0
        %v589 = vpop.f32.mrb[0].mxu0
        %v590 = vadd.f32 %v528, %v589
        %v591 = vpop.f32.mrb[0].mxu0
        %592 = vmatprep.mubr.bf16.mxu0 0
        %593 = vmatmul.mubr.bf16.gmra.mrb[0].mxu0 %v549
        %v594 = vpop.f32.mrb[0].mxu0
        %v595 = vadd.f32 %v533, %v594
        %v596 = vpop.f32.mrb[0].mxu0
        %v597 = vpop.f32.mrb[0].mxu0
        %v598 = vadd.f32 %v538, %v597
        %v599 = vpop.f32.mrb[0].mxu0
        %600 = vdwg.mxu0
        %v601 = vtanh.pop %v587
        %v602 = vtanh.pop %v590
        %v603 = vtanh.pop %v595
        %v604 = vtanh.pop %v598
        %v605 = vpack.c.bf16 %v497, %v496
        %v606 = vpack.c.bf16 %v499, %v498
        %v607 = vpack.c.bf16 %v501, %v500
        %v608 = vpack.c.bf16 %v503, %v502
        %v609 = vpack.c.bf16 %v505, %v504
        %v610 = vpack.c.bf16 %v507, %v506
        %v611 = vpack.c.bf16 %v509, %v508
        %v612 = vpack.c.bf16 %v511, %v510
        %613 = vmatprep.subr.bf16.mxu0 0
        %614 = vmatpush1.bf16.msra.mxu0 %v605
        %615 = vmatprep.subr.bf16.mxu0 0
        %616 = vmatpush1.bf16.msra.mxu0 %v606
        %617 = vmatprep.subr.bf16.mxu0 0
        %618 = vmatpush1.bf16.msra.mxu0 %v607
        %619 = vmatprep.subr.bf16.mxu0 0
        %620 = vmatpush1.bf16.msra.mxu0 %v608
        %621 = vmatprep.subr.bf16.mxu0 0
        %622 = vmatpush1.bf16.msra.mxu0 %v609
        %623 = vmatprep.subr.bf16.mxu0 0
        %624 = vmatpush1.bf16.msra.mxu0 %v610
        %625 = vmatprep.subr.bf16.mxu0 0
        %626 = vmatpush1.bf16.msra.mxu0 %v611
        %627 = vmatprep.subr.bf16.mxu0 0
        %628 = vmatpush1.bf16.msra.mxu0 %v612
        %629 = vmatprep.subr.bf16.mxu0 0
        %630 = vmatpush1.bf16.msra.mxu0 0
        %631 = vmatprep.subr.bf16.mxu0 0
        %632 = vmatpush1.bf16.msra.mxu0 0
        %633 = vmatprep.subr.bf16.mxu0 0
        %634 = vmatpush1.bf16.msra.mxu0 0
        %635 = vmatprep.subr.bf16.mxu0 0
        %636 = vmatpush1.bf16.msra.mxu0 0
        %637 = vmatprep.subr.bf16.mxu0 0
        %638 = vmatpush1.bf16.msra.mxu0 0
        %639 = vmatprep.subr.bf16.mxu0 0
        %640 = vmatpush1.bf16.msra.mxu0 0
        %641 = vmatprep.subr.bf16.mxu0 0
        %642 = vmatpush1.bf16.msra.mxu0 0
        %643 = vmatprep.subr.bf16.mxu0 0
        %644 = vmatpush1.bf16.msra.mxu0 0
        %645 = vmatprep.mubr.bf16.mxu0 0
        %646 = vmatmul.mubr.bf16.gmra.mrb[0].mxu0 %v548
        %v647 = vpop.f32.mrb[0].mxu0
        %v648 = vadd.f32 %v523, %v647
        %v649 = vpop.f32.mrb[0].mxu0
        %v650 = vpop.f32.mrb[0].mxu0
        %v651 = vadd.f32 %v528, %v650
        %v652 = vpop.f32.mrb[0].mxu0
        %653 = vmatprep.mubr.bf16.mxu0 0
        %654 = vmatmul.mubr.bf16.gmra.mrb[0].mxu0 %v549
        %v655 = vpop.f32.mrb[0].mxu0
        %v656 = vadd.f32 %v533, %v655
        %v657 = vpop.f32.mrb[0].mxu0
        %v658 = vpop.f32.mrb[0].mxu0
        %v659 = vadd.f32 %v538, %v658
        %v660 = vpop.f32.mrb[0].mxu0
        %661 = vdwg.mxu0
        %v662 = vtanh.pop %v648
        %v663 = vtanh.pop %v651
        %v664 = vtanh.pop %v656
        %v665 = vtanh.pop %v659
        %v666 = vpack.c.bf16 %v602, %v601
        %v667 = vpack.c.bf16 %v604, %v603
        %669 = vset.pattern.permute.xlu0 0
        %670 = vperm.xlu0 %669, %v453
        %v671 = vpop.permute.xlu0 %670
        %674 = vset.pattern.permute.xlu0 0
        %675 = vperm.xlu0 %674, %v454
        %v676 = vpop.permute.xlu0 %675
        %679 = vset.pattern.permute.xlu0 0
        %680 = vperm.xlu0 %679, %v455
        %v681 = vpop.permute.xlu0 %680
        %684 = vset.pattern.permute.xlu0 0
        %685 = vperm.xlu0 %684, %v456
        %v686 = vpop.permute.xlu0 %685
        %v692 = vunpack.c.l.b16 %v422
        %v693 = vunpack.c.l.b16 %v423
        %v694 = vunpack.c.l.b16 %v424
        %v695 = vunpack.c.l.b16 %v425
        %v696 = vpack.c.b16 %v693, %v692
        %v697 = vpack.c.b16 %v695, %v694
        %vm698 = vcmask 261120
        %v700 = vsel %vm698, %v696, 0
        %v703 = vsel %vm698, %v697, 0
        %705 = vmatprep.subr.bf16.mxu0 0
        %706 = vmatpush1.bf16.msra.mxu0 %v666
        %707 = vmatprep.subr.bf16.mxu0 0
        %708 = vmatpush1.bf16.msra.mxu0 %v667
        %709 = vmatprep.subr.bf16.mxu0 0
        %710 = vmatpush1.bf16.msra.mxu0 0
        %711 = vmatprep.subr.bf16.mxu0 0
        %712 = vmatpush1.bf16.msra.mxu0 0
        %713 = vmatprep.subr.bf16.mxu0 0
        %714 = vmatpush1.bf16.msra.mxu0 0
        %715 = vmatprep.subr.bf16.mxu0 0
        %716 = vmatpush1.bf16.msra.mxu0 0
        %717 = vmatprep.subr.bf16.mxu0 0
        %718 = vmatpush1.bf16.msra.mxu0 0
        %719 = vmatprep.subr.bf16.mxu0 0
        %720 = vmatpush1.bf16.msra.mxu0 0
        %721 = vmatprep.subr.bf16.mxu0 0
        %722 = vmatpush1.bf16.msra.mxu0 0
        %723 = vmatprep.subr.bf16.mxu0 0
        %724 = vmatpush1.bf16.msra.mxu0 0
        %725 = vmatprep.subr.bf16.mxu0 0
        %726 = vmatpush1.bf16.msra.mxu0 0
        %727 = vmatprep.subr.bf16.mxu0 0
        %728 = vmatpush1.bf16.msra.mxu0 0
        %729 = vmatprep.subr.bf16.mxu0 0
        %730 = vmatpush1.bf16.msra.mxu0 0
        %731 = vmatprep.subr.bf16.mxu0 0
        %732 = vmatpush1.bf16.msra.mxu0 0
        %733 = vmatprep.subr.bf16.mxu0 0
        %734 = vmatpush1.bf16.msra.mxu0 0
        %735 = vmatprep.subr.bf16.mxu0 0
        %736 = vmatpush1.bf16.msra.mxu0 0
        %737 = vmatprep.mubr.bf16.mxu0 0
        %738 = vmatmul.mubr.bf16.gmra.mrb[0].mxu0 %v700
        %v739 = vpop.f32.mrb[0].mxu0
        %v740 = vadd.f32 %v671, %v739
        %v741 = vpop.f32.mrb[0].mxu0
        %v742 = vpop.f32.mrb[0].mxu0
        %v743 = vadd.f32 %v676, %v742
        %v744 = vpop.f32.mrb[0].mxu0
        %745 = vmatprep.mubr.bf16.mxu0 0
        %746 = vmatmul.mubr.bf16.gmra.mrb[0].mxu0 %v703
        %v747 = vpop.f32.mrb[0].mxu0
        %v748 = vadd.f32 %v681, %v747
        %v749 = vpop.f32.mrb[0].mxu0
        %v750 = vpop.f32.mrb[0].mxu0
        %v751 = vadd.f32 %v686, %v750
        %v752 = vpop.f32.mrb[0].mxu0
        %753 = vdwg.mxu0
        %v754 = vtanh.pop %v740
        %v755 = vtanh.pop %v743
        %v756 = vtanh.pop %v748
        %v757 = vtanh.pop %v751
        %v758 = vpack.c.bf16 %v663, %v662
        %v759 = vpack.c.bf16 %v665, %v664
        %760 = vmatprep.subr.bf16.mxu0 0
        %761 = vmatpush1.bf16.msra.mxu0 %v758
        %762 = vmatprep.subr.bf16.mxu0 0
        %763 = vmatpush1.bf16.msra.mxu0 %v759
        %764 = vmatprep.subr.bf16.mxu0 0
        %765 = vmatpush1.bf16.msra.mxu0 0
        %766 = vmatprep.subr.bf16.mxu0 0
        %767 = vmatpush1.bf16.msra.mxu0 0
        %768 = vmatprep.subr.bf16.mxu0 0
        %769 = vmatpush1.bf16.msra.mxu0 0
        %770 = vmatprep.subr.bf16.mxu0 0
        %771 = vmatpush1.bf16.msra.mxu0 0
        %772 = vmatprep.subr.bf16.mxu0 0
        %773 = vmatpush1.bf16.msra.mxu0 0
        %774 = vmatprep.subr.bf16.mxu0 0
        %775 = vmatpush1.bf16.msra.mxu0 0
        %776 = vmatprep.subr.bf16.mxu0 0
        %777 = vmatpush1.bf16.msra.mxu0 0
        %778 = vmatprep.subr.bf16.mxu0 0
        %779 = vmatpush1.bf16.msra.mxu0 0
        %780 = vmatprep.subr.bf16.mxu0 0
        %781 = vmatpush1.bf16.msra.mxu0 0
        %782 = vmatprep.subr.bf16.mxu0 0
        %783 = vmatpush1.bf16.msra.mxu0 0
        %784 = vmatprep.subr.bf16.mxu0 0
        %785 = vmatpush1.bf16.msra.mxu0 0
        %786 = vmatprep.subr.bf16.mxu0 0
        %787 = vmatpush1.bf16.msra.mxu0 0
        %788 = vmatprep.subr.bf16.mxu0 0
        %789 = vmatpush1.bf16.msra.mxu0 0
        %790 = vmatprep.subr.bf16.mxu0 0
        %791 = vmatpush1.bf16.msra.mxu0 0
        %792 = vmatprep.mubr.bf16.mxu0 0
        %793 = vmatmul.mubr.bf16.gmra.mrb[0].mxu0 %v700
        %v794 = vpop.f32.mrb[0].mxu0
        %v795 = vadd.f32 %v671, %v794
        %v796 = vpop.f32.mrb[0].mxu0
        %v797 = vpop.f32.mrb[0].mxu0
        %v798 = vadd.f32 %v676, %v797
        %v799 = vpop.f32.mrb[0].mxu0
        %800 = vmatprep.mubr.bf16.mxu0 0
        %801 = vmatmul.mubr.bf16.gmra.mrb[0].mxu0 %v703
        %v802 = vpop.f32.mrb[0].mxu0
        %v803 = vadd.f32 %v681, %v802
        %v804 = vpop.f32.mrb[0].mxu0
        %v805 = vpop.f32.mrb[0].mxu0
        %v806 = vadd.f32 %v686, %v805
        %v807 = vpop.f32.mrb[0].mxu0
        %808 = vdwg.mxu0
        %v809 = vtanh.pop %v795
        %v810 = vtanh.pop %v798
        %v811 = vtanh.pop %v803
        %v812 = vtanh.pop %v806
        %v813 = vpack.c.bf16 %v755, %v754
        %v814 = vpack.c.bf16 %v757, %v756
        %816 = vset.pattern.permute.xlu0 0
        %817 = vperm.xlu0 %816, %v458
        %v818 = vpop.permute.xlu0 %817
        %821 = vset.pattern.permute.xlu0 0
        %822 = vperm.xlu0 %821, %v459
        %v823 = vpop.permute.xlu0 %822
        %826 = vset.pattern.permute.xlu0 0
        %827 = vperm.xlu0 %826, %v460
        %v828 = vpop.permute.xlu0 %827
        %831 = vset.pattern.permute.xlu0 0
        %832 = vperm.xlu0 %831, %v461
        %v833 = vpop.permute.xlu0 %832
        %v839 = vunpack.c.l.b16 %v427
        %v840 = vunpack.c.l.b16 %v428
        %v841 = vunpack.c.l.b16 %v429
        %v842 = vunpack.c.l.b16 %v430
        %v843 = vpack.c.b16 %v840, %v839
        %v844 = vpack.c.b16 %v842, %v841
        %v846 = vsel %vm698, %v843, 0
        %v849 = vsel %vm698, %v844, 0
        %851 = vmatprep.subr.bf16.mxu0 0
        %852 = vmatpush1.bf16.msra.mxu0 %v813
        %853 = vmatprep.subr.bf16.mxu0 0
        %854 = vmatpush1.bf16.msra.mxu0 %v814
        %855 = vmatprep.subr.bf16.mxu0 0
        %856 = vmatpush1.bf16.msra.mxu0 0
        %857 = vmatprep.subr.bf16.mxu0 0
        %858 = vmatpush1.bf16.msra.mxu0 0
        %859 = vmatprep.subr.bf16.mxu0 0
        %860 = vmatpush1.bf16.msra.mxu0 0
        %861 = vmatprep.subr.bf16.mxu0 0
        %862 = vmatpush1.bf16.msra.mxu0 0
        %863 = vmatprep.subr.bf16.mxu0 0
        %864 = vmatpush1.bf16.msra.mxu0 0
        %865 = vmatprep.subr.bf16.mxu0 0
        %866 = vmatpush1.bf16.msra.mxu0 0
        %867 = vmatprep.subr.bf16.mxu0 0
        %868 = vmatpush1.bf16.msra.mxu0 0
        %869 = vmatprep.subr.bf16.mxu0 0
        %870 = vmatpush1.bf16.msra.mxu0 0
        %871 = vmatprep.subr.bf16.mxu0 0
        %872 = vmatpush1.bf16.msra.mxu0 0
        %873 = vmatprep.subr.bf16.mxu0 0
        %874 = vmatpush1.bf16.msra.mxu0 0
        %875 = vmatprep.subr.bf16.mxu0 0
        %876 = vmatpush1.bf16.msra.mxu0 0
        %877 = vmatprep.subr.bf16.mxu0 0
        %878 = vmatpush1.bf16.msra.mxu0 0
        %879 = vmatprep.subr.bf16.mxu0 0
        %880 = vmatpush1.bf16.msra.mxu0 0
        %881 = vmatprep.subr.bf16.mxu0 0
        %882 = vmatpush1.bf16.msra.mxu0 0
        %883 = vmatprep.mubr.bf16.mxu0 0
        %884 = vmatmul.mubr.bf16.gmra.mrb[0].mxu0 %v846
        %v885 = vpop.f32.mrb[0].mxu0
        %v886 = vadd.f32 %v818, %v885
        %v887 = vpop.f32.mrb[0].mxu0
        %v888 = vpop.f32.mrb[0].mxu0
        %v889 = vadd.f32 %v823, %v888
        %v890 = vpop.f32.mrb[0].mxu0
        %891 = vmatprep.mubr.bf16.mxu0 0
        %892 = vmatmul.mubr.bf16.gmra.mrb[0].mxu0 %v849
        %v893 = vpop.f32.mrb[0].mxu0
        %v894 = vadd.f32 %v828, %v893
        %v895 = vpop.f32.mrb[0].mxu0
        %v896 = vpop.f32.mrb[0].mxu0
        %v897 = vadd.f32 %v833, %v896
        %v898 = vpop.f32.mrb[0].mxu0
        %899 = vdwg.mxu0
        %v900 = vpack.c.bf16 %v810, %v809
        %v901 = vpack.c.bf16 %v812, %v811
        %902 = vmatprep.subr.bf16.mxu0 0
        %903 = vmatpush1.bf16.msra.mxu0 %v900
        %904 = vmatprep.subr.bf16.mxu0 0
        %905 = vmatpush1.bf16.msra.mxu0 %v901
        %906 = vmatprep.subr.bf16.mxu0 0
        %907 = vmatpush1.bf16.msra.mxu0 0
        %908 = vmatprep.subr.bf16.mxu0 0
        %909 = vmatpush1.bf16.msra.mxu0 0
        %910 = vmatprep.subr.bf16.mxu0 0
        %911 = vmatpush1.bf16.msra.mxu0 0
        %912 = vmatprep.subr.bf16.mxu0 0
        %913 = vmatpush1.bf16.msra.mxu0 0
        %914 = vmatprep.subr.bf16.mxu0 0
        %915 = vmatpush1.bf16.msra.mxu0 0
        %916 = vmatprep.subr.bf16.mxu0 0
        %917 = vmatpush1.bf16.msra.mxu0 0
        %918 = vmatprep.subr.bf16.mxu0 0
        %919 = vmatpush1.bf16.msra.mxu0 0
        %920 = vmatprep.subr.bf16.mxu0 0
        %921 = vmatpush1.bf16.msra.mxu0 0
        %922 = vmatprep.subr.bf16.mxu0 0
        %923 = vmatpush1.bf16.msra.mxu0 0
        %924 = vmatprep.subr.bf16.mxu0 0
        %925 = vmatpush1.bf16.msra.mxu0 0
        %926 = vmatprep.subr.bf16.mxu0 0
        %927 = vmatpush1.bf16.msra.mxu0 0
        %928 = vmatprep.subr.bf16.mxu0 0
        %929 = vmatpush1.bf16.msra.mxu0 0
        %930 = vmatprep.subr.bf16.mxu0 0
        %931 = vmatpush1.bf16.msra.mxu0 0
        %932 = vmatprep.subr.bf16.mxu0 0
        %933 = vmatpush1.bf16.msra.mxu0 0
        %934 = vmatprep.mubr.bf16.mxu0 0
        %935 = vmatmul.mubr.bf16.gmra.mrb[0].mxu0 %v846
        %v936 = vpop.f32.mrb[0].mxu0
        %v937 = vadd.f32 %v818, %v936
        %v938 = vpop.f32.mrb[0].mxu0
        %v939 = vpop.f32.mrb[0].mxu0
        %v940 = vadd.f32 %v823, %v939
        %v941 = vpop.f32.mrb[0].mxu0
        %942 = vmatprep.mubr.bf16.mxu0 0
        %943 = vmatmul.mubr.bf16.gmra.mrb[0].mxu0 %v849
        %v944 = vpop.f32.mrb[0].mxu0
        %v945 = vadd.f32 %v828, %v944
        %v946 = vpop.f32.mrb[0].mxu0
        %v947 = vpop.f32.mrb[0].mxu0
        %v948 = vadd.f32 %v833, %v947
        %v949 = vpop.f32.mrb[0].mxu0
        %950 = vdwg.mxu0
        %v951 = vpack.c.bf16 %v889, %v886
        %v952 = vpack.c.bf16 %v897, %v894
        %954 = vset.pattern.permute.xlu0 0
        %955 = vperm.xlu0 %954, %v462
        %v956 = vpop.permute.xlu0 %955
        %959 = vset.pattern.permute.xlu0 0
        %960 = vperm.xlu0 %959, %v463
        %v961 = vpop.permute.xlu0 %960
        %964 = vset.pattern.permute.xlu0 0
        %965 = vperm.xlu0 %964, %v464
        %v966 = vpop.permute.xlu0 %965
        %969 = vset.pattern.permute.xlu0 0
        %970 = vperm.xlu0 %969, %v465
        %v971 = vpop.permute.xlu0 %970
        %974 = vset.pattern.permute.xlu0 0
        %975 = vperm.xlu0 %974, %v466
        %v976 = vpop.permute.xlu0 %975
        %979 = vset.pattern.permute.xlu0 0
        %980 = vperm.xlu0 %979, %v467
        %v981 = vpop.permute.xlu0 %980
        %984 = vset.pattern.permute.xlu0 0
        %985 = vperm.xlu0 %984, %v468
        %v986 = vpop.permute.xlu0 %985
        %989 = vset.pattern.permute.xlu0 0
        %990 = vperm.xlu0 %989, %v469
        %v991 = vpop.permute.xlu0 %990
        %v1001 = vunpack.c.l.b16 %v431
        %v1002 = vunpack.c.l.b16 %v432
        %v1003 = vunpack.c.l.b16 %v433
        %v1004 = vunpack.c.l.b16 %v434
        %v1005 = vunpack.c.l.b16 %v435
        %v1006 = vunpack.c.l.b16 %v436
        %v1007 = vunpack.c.l.b16 %v437
        %v1008 = vunpack.c.l.b16 %v438
        %v1009 = vpack.c.b16 %v1002, %v1001
        %v1010 = vpack.c.b16 %v1004, %v1003
        %v1011 = vpack.c.b16 %v1006, %v1005
        %v1012 = vpack.c.b16 %v1008, %v1007
        %v1014 = vsel %vm698, %v1009, 0
        %v1017 = vsel %vm698, %v1010, 0
        %v1020 = vsel %vm698, %v1011, 0
        %v1023 = vsel %vm698, %v1012, 0
        %1025 = vmatprep.subr.bf16.mxu0 0
        %1026 = vmatpush1.bf16.msra.mxu0 %v951
        %1027 = vmatprep.subr.bf16.mxu0 0
        %1028 = vmatpush1.bf16.msra.mxu0 %v952
        %1029 = vmatprep.subr.bf16.mxu0 0
        %1030 = vmatpush1.bf16.msra.mxu0 0
        %1031 = vmatprep.subr.bf16.mxu0 0
        %1032 = vmatpush1.bf16.msra.mxu0 0
        %1033 = vmatprep.subr.bf16.mxu0 0
        %1034 = vmatpush1.bf16.msra.mxu0 0
        %1035 = vmatprep.subr.bf16.mxu0 0
        %1036 = vmatpush1.bf16.msra.mxu0 0
        %1037 = vmatprep.subr.bf16.mxu0 0
        %1038 = vmatpush1.bf16.msra.mxu0 0
        %1039 = vmatprep.subr.bf16.mxu0 0
        %1040 = vmatpush1.bf16.msra.mxu0 0
        %1041 = vmatprep.subr.bf16.mxu0 0
        %1042 = vmatpush1.bf16.msra.mxu0 0
        %1043 = vmatprep.subr.bf16.mxu0 0
        %1044 = vmatpush1.bf16.msra.mxu0 0
        %1045 = vmatprep.subr.bf16.mxu0 0
        %1046 = vmatpush1.bf16.msra.mxu0 0
        %1047 = vmatprep.subr.bf16.mxu0 0
        %1048 = vmatpush1.bf16.msra.mxu0 0
        %1049 = vmatprep.subr.bf16.mxu0 0
        %1050 = vmatpush1.bf16.msra.mxu0 0
        %1051 = vmatprep.subr.bf16.mxu0 0
        %1052 = vmatpush1.bf16.msra.mxu0 0
        %1053 = vmatprep.subr.bf16.mxu0 0
        %1054 = vmatpush1.bf16.msra.mxu0 0
        %1055 = vmatprep.subr.bf16.mxu0 0
        %1056 = vmatpush1.bf16.msra.mxu0 0
        %1057 = vmatprep.mubr.bf16.mxu0 0
        %1058 = vmatmul.mubr.bf16.gmra.mrb[0].mxu0 %v1014
        %v1059 = vpop.f32.mrb[0].mxu0
        %v1060 = vadd.f32 %v956, %v1059
        %v1061 = vpop.f32.mrb[0].mxu0
        %v1062 = vpop.f32.mrb[0].mxu0
        %v1063 = vadd.f32 %v961, %v1062
        %v1064 = vpop.f32.mrb[0].mxu0
        %1065 = vmatprep.mubr.bf16.mxu0 0
        %1066 = vmatmul.mubr.bf16.gmra.mrb[0].mxu0 %v1017
        %v1067 = vpop.f32.mrb[0].mxu0
        %v1068 = vadd.f32 %v966, %v1067
        %v1069 = vpop.f32.mrb[0].mxu0
        %v1070 = vpop.f32.mrb[0].mxu0
        %v1071 = vadd.f32 %v971, %v1070
        %v1072 = vpop.f32.mrb[0].mxu0
        %1073 = vmatprep.mubr.bf16.mxu0 0
        %1074 = vmatmul.mubr.bf16.gmra.mrb[0].mxu0 %v1020
        %v1075 = vpop.f32.mrb[0].mxu0
        %v1076 = vadd.f32 %v976, %v1075
        %v1077 = vpop.f32.mrb[0].mxu0
        %v1078 = vpop.f32.mrb[0].mxu0
        %v1079 = vadd.f32 %v981, %v1078
        %v1080 = vpop.f32.mrb[0].mxu0
        %1081 = vmatprep.mubr.bf16.mxu0 0
        %1082 = vmatmul.mubr.bf16.gmra.mrb[0].mxu0 %v1023
        %v1083 = vpop.f32.mrb[0].mxu0
        %v1084 = vadd.f32 %v986, %v1083
        %v1085 = vpop.f32.mrb[0].mxu0
        %v1086 = vpop.f32.mrb[0].mxu0
        %v1087 = vadd.f32 %v991, %v1086
        %v1088 = vpop.f32.mrb[0].mxu0
        %1089 = vdwg.mxu0
        %v1090 = vtanh.pop %v1060
        %v1091 = vtanh.pop %v1063
        %v1092 = vtanh.pop %v1068
        %v1093 = vtanh.pop %v1071
        %v1094 = vtanh.pop %v1076
        %v1095 = vtanh.pop %v1079
        %v1096 = vtanh.pop %v1084
        %v1097 = vtanh.pop %v1087
        %v1098 = vpack.c.bf16 %v940, %v937
        %v1099 = vpack.c.bf16 %v948, %v945
        %1100 = vmatprep.subr.bf16.mxu0 0
        %1101 = vmatpush1.bf16.msra.mxu0 %v1098
        %1102 = vmatprep.subr.bf16.mxu0 0
        %1103 = vmatpush1.bf16.msra.mxu0 %v1099
        %1104 = vmatprep.subr.bf16.mxu0 0
        %1105 = vmatpush1.bf16.msra.mxu0 0
        %1106 = vmatprep.subr.bf16.mxu0 0
        %1107 = vmatpush1.bf16.msra.mxu0 0
        %1108 = vmatprep.subr.bf16.mxu0 0
        %1109 = vmatpush1.bf16.msra.mxu0 0
        %1110 = vmatprep.subr.bf16.mxu0 0
        %1111 = vmatpush1.bf16.msra.mxu0 0
        %1112 = vmatprep.subr.bf16.mxu0 0
        %1113 = vmatpush1.bf16.msra.mxu0 0
        %1114 = vmatprep.subr.bf16.mxu0 0
        %1115 = vmatpush1.bf16.msra.mxu0 0
        %1116 = vmatprep.subr.bf16.mxu0 0
        %1117 = vmatpush1.bf16.msra.mxu0 0
        %1118 = vmatprep.subr.bf16.mxu0 0
        %1119 = vmatpush1.bf16.msra.mxu0 0
        %1120 = vmatprep.subr.bf16.mxu0 0
        %1121 = vmatpush1.bf16.msra.mxu0 0
        %1122 = vmatprep.subr.bf16.mxu0 0
        %1123 = vmatpush1.bf16.msra.mxu0 0
        %1124 = vmatprep.subr.bf16.mxu0 0
        %1125 = vmatpush1.bf16.msra.mxu0 0
        %1126 = vmatprep.subr.bf16.mxu0 0
        %1127 = vmatpush1.bf16.msra.mxu0 0
        %1128 = vmatprep.subr.bf16.mxu0 0
        %1129 = vmatpush1.bf16.msra.mxu0 0
        %1130 = vmatprep.subr.bf16.mxu0 0
        %1131 = vmatpush1.bf16.msra.mxu0 0
        %1132 = vmatprep.mubr.bf16.mxu0 0
        %1133 = vmatmul.mubr.bf16.gmra.mrb[0].mxu0 %v1014
        %v1134 = vpop.f32.mrb[0].mxu0
        %v1135 = vadd.f32 %v956, %v1134
        %v1136 = vpop.f32.mrb[0].mxu0
        %v1137 = vpop.f32.mrb[0].mxu0
        %v1138 = vadd.f32 %v961, %v1137
        %v1139 = vpop.f32.mrb[0].mxu0
        %1140 = vmatprep.mubr.bf16.mxu0 0
        %1141 = vmatmul.mubr.bf16.gmra.mrb[0].mxu0 %v1017
        %v1142 = vpop.f32.mrb[0].mxu0
        %v1143 = vadd.f32 %v966, %v1142
        %v1144 = vpop.f32.mrb[0].mxu0
        %v1145 = vpop.f32.mrb[0].mxu0
        %v1146 = vadd.f32 %v971, %v1145
        %v1147 = vpop.f32.mrb[0].mxu0
        %1148 = vmatprep.mubr.bf16.mxu0 0
        %1149 = vmatmul.mubr.bf16.gmra.mrb[0].mxu0 %v1020
        %v1150 = vpop.f32.mrb[0].mxu0
        %v1151 = vadd.f32 %v976, %v1150
        %v1152 = vpop.f32.mrb[0].mxu0
        %v1153 = vpop.f32.mrb[0].mxu0
        %v1154 = vadd.f32 %v981, %v1153
        %v1155 = vpop.f32.mrb[0].mxu0
        %1156 = vmatprep.mubr.bf16.mxu0 0
        %1157 = vmatmul.mubr.bf16.gmra.mrb[0].mxu0 %v1023
        %v1158 = vpop.f32.mrb[0].mxu0
        %v1159 = vadd.f32 %v986, %v1158
        %v1160 = vpop.f32.mrb[0].mxu0
        %v1161 = vpop.f32.mrb[0].mxu0
        %v1162 = vadd.f32 %v991, %v1161
        %v1163 = vpop.f32.mrb[0].mxu0
        %1164 = vdwg.mxu0
        %v1165 = vtanh.pop %v1135
        %v1166 = vtanh.pop %v1138
        %v1167 = vtanh.pop %v1143
        %v1168 = vtanh.pop %v1146
        %v1169 = vtanh.pop %v1151
        %v1170 = vtanh.pop %v1154
        %v1171 = vtanh.pop %v1159
        %v1172 = vtanh.pop %v1162
        %v1173 = vpack.c.bf16 %v1091, %v1090
        %v1174 = vpack.c.bf16 %v1093, %v1092
        %v1175 = vpack.c.bf16 %v1095, %v1094
        %v1176 = vpack.c.bf16 %v1097, %v1096
        %1178 = vset.pattern.permute.xlu0 0
        %1179 = vperm.xlu0 %1178, %v471
        %v1180 = vpop.permute.xlu0 %1179
        %1183 = vset.pattern.permute.xlu0 0
        %1184 = vperm.xlu0 %1183, %v472
        %v1185 = vpop.permute.xlu0 %1184
        %1188 = vset.pattern.permute.xlu0 0
        %1189 = vperm.xlu0 %1188, %v473
        %v1190 = vpop.permute.xlu0 %1189
        %1193 = vset.pattern.permute.xlu0 0
        %1194 = vperm.xlu0 %1193, %v474
        %v1195 = vpop.permute.xlu0 %1194
        %1198 = vset.pattern.permute.xlu0 0
        %1199 = vperm.xlu0 %1198, %v475
        %v1200 = vpop.permute.xlu0 %1199
        %1203 = vset.pattern.permute.xlu0 0
        %1204 = vperm.xlu0 %1203, %v476
        %v1205 = vpop.permute.xlu0 %1204
        %1208 = vset.pattern.permute.xlu0 0
        %1209 = vperm.xlu0 %1208, %v477
        %v1210 = vpop.permute.xlu0 %1209
        %1213 = vset.pattern.permute.xlu0 0
        %1214 = vperm.xlu0 %1213, %v478
        %v1215 = vpop.permute.xlu0 %1214
        %v1225 = vunpack.c.l.b16 %v439
        %v1226 = vunpack.c.l.b16 %v440
        %v1227 = vunpack.c.l.b16 %v441
        %v1228 = vunpack.c.l.b16 %v442
        %v1229 = vunpack.c.l.b16 %v443
        %v1230 = vunpack.c.l.b16 %v444
        %v1231 = vunpack.c.l.b16 %v445
        %v1232 = vunpack.c.l.b16 %v446
        %v1233 = vpack.c.b16 %v1226, %v1225
        %v1234 = vpack.c.b16 %v1228, %v1227
        %v1235 = vpack.c.b16 %v1230, %v1229
        %v1236 = vpack.c.b16 %v1232, %v1231
        %vm1237 = vcmask 523264
        %v1239 = vsel %vm1237, %v1233, 0
        %v1242 = vsel %vm1237, %v1234, 0
        %v1245 = vsel %vm1237, %v1235, 0
        %v1248 = vsel %vm1237, %v1236, 0
        %1250 = vmatprep.subr.bf16.mxu0 0
        %1251 = vmatpush1.bf16.msra.mxu0 %v1173
        %1252 = vmatprep.subr.bf16.mxu0 0
        %1253 = vmatpush1.bf16.msra.mxu0 %v1174
        %1254 = vmatprep.subr.bf16.mxu0 0
        %1255 = vmatpush1.bf16.msra.mxu0 %v1175
        %1256 = vmatprep.subr.bf16.mxu0 0
        %1257 = vmatpush1.bf16.msra.mxu0 %v1176
        %1258 = vmatprep.subr.bf16.mxu0 0
        %1259 = vmatpush1.bf16.msra.mxu0 0
        %1260 = vmatprep.subr.bf16.mxu0 0
        %1261 = vmatpush1.bf16.msra.mxu0 0
        %1262 = vmatprep.subr.bf16.mxu0 0
        %1263 = vmatpush1.bf16.msra.mxu0 0
        %1264 = vmatprep.subr.bf16.mxu0 0
        %1265 = vmatpush1.bf16.msra.mxu0 0
        %1266 = vmatprep.subr.bf16.mxu0 0
        %1267 = vmatpush1.bf16.msra.mxu0 0
        %1268 = vmatprep.subr.bf16.mxu0 0
        %1269 = vmatpush1.bf16.msra.mxu0 0
        %1270 = vmatprep.subr.bf16.mxu0 0
        %1271 = vmatpush1.bf16.msra.mxu0 0
        %1272 = vmatprep.subr.bf16.mxu0 0
        %1273 = vmatpush1.bf16.msra.mxu0 0
        %1274 = vmatprep.subr.bf16.mxu0 0
        %1275 = vmatpush1.bf16.msra.mxu0 0
        %1276 = vmatprep.subr.bf16.mxu0 0
        %1277 = vmatpush1.bf16.msra.mxu0 0
        %1278 = vmatprep.subr.bf16.mxu0 0
        %1279 = vmatpush1.bf16.msra.mxu0 0
        %1280 = vmatprep.subr.bf16.mxu0 0
        %1281 = vmatpush1.bf16.msra.mxu0 0
        %1282 = vmatprep.mubr.bf16.mxu0 0
        %1283 = vmatmul.mubr.bf16.gmra.mrb[0].mxu0 %v1239
        %v1284 = vpop.f32.mrb[0].mxu0
        %v1285 = vadd.f32 %v1180, %v1284
        %v1286 = vpop.f32.mrb[0].mxu0
        %v1287 = vpop.f32.mrb[0].mxu0
        %v1288 = vadd.f32 %v1185, %v1287
        %v1289 = vpop.f32.mrb[0].mxu0
        %1290 = vmatprep.mubr.bf16.mxu0 0
        %1291 = vmatmul.mubr.bf16.gmra.mrb[0].mxu0 %v1242
        %v1292 = vpop.f32.mrb[0].mxu0
        %v1293 = vadd.f32 %v1190, %v1292
        %v1294 = vpop.f32.mrb[0].mxu0
        %v1295 = vpop.f32.mrb[0].mxu0
        %v1296 = vadd.f32 %v1195, %v1295
        %v1297 = vpop.f32.mrb[0].mxu0
        %1298 = vmatprep.mubr.bf16.mxu0 0
        %1299 = vmatmul.mubr.bf16.gmra.mrb[0].mxu0 %v1245
        %v1300 = vpop.f32.mrb[0].mxu0
        %v1301 = vadd.f32 %v1200, %v1300
        %v1302 = vpop.f32.mrb[0].mxu0
        %v1303 = vpop.f32.mrb[0].mxu0
        %v1304 = vadd.f32 %v1205, %v1303
        %v1305 = vpop.f32.mrb[0].mxu0
        %1306 = vmatprep.mubr.bf16.mxu0 0
        %1307 = vmatmul.mubr.bf16.gmra.mrb[0].mxu0 %v1248
        %v1308 = vpop.f32.mrb[0].mxu0
        %v1309 = vadd.f32 %v1210, %v1308
        %v1310 = vpop.f32.mrb[0].mxu0
        %v1311 = vpop.f32.mrb[0].mxu0
        %v1312 = vadd.f32 %v1215, %v1311
        %v1313 = vpop.f32.mrb[0].mxu0
        %1314 = vdwg.mxu0
        %v1315 = vtanh.pop %v1285
        %v1316 = vtanh.pop %v1288
        %v1317 = vtanh.pop %v1293
        %v1318 = vtanh.pop %v1296
        %v1319 = vtanh.pop %v1301
        %v1320 = vtanh.pop %v1304
        %v1321 = vtanh.pop %v1309
        %v1322 = vtanh.pop %v1312
        %v1323 = vpack.c.bf16 %v1166, %v1165
        %v1324 = vpack.c.bf16 %v1168, %v1167
        %v1325 = vpack.c.bf16 %v1170, %v1169
        %v1326 = vpack.c.bf16 %v1172, %v1171
        %1327 = vmatprep.subr.bf16.mxu0 0
        %1328 = vmatpush1.bf16.msra.mxu0 %v1323
        %1329 = vmatprep.subr.bf16.mxu0 0
        %1330 = vmatpush1.bf16.msra.mxu0 %v1324
        %1331 = vmatprep.subr.bf16.mxu0 0
        %1332 = vmatpush1.bf16.msra.mxu0 %v1325
        %1333 = vmatprep.subr.bf16.mxu0 0
        %1334 = vmatpush1.bf16.msra.mxu0 %v1326
        %1335 = vmatprep.subr.bf16.mxu0 0
        %1336 = vmatpush1.bf16.msra.mxu0 0
        %1337 = vmatprep.subr.bf16.mxu0 0
        %1338 = vmatpush1.bf16.msra.mxu0 0
        %1339 = vmatprep.subr.bf16.mxu0 0
        %1340 = vmatpush1.bf16.msra.mxu0 0
        %1341 = vmatprep.subr.bf16.mxu0 0
        %1342 = vmatpush1.bf16.msra.mxu0 0
        %1343 = vmatprep.subr.bf16.mxu0 0
        %1344 = vmatpush1.bf16.msra.mxu0 0
        %1345 = vmatprep.subr.bf16.mxu0 0
        %1346 = vmatpush1.bf16.msra.mxu0 0
        %1347 = vmatprep.subr.bf16.mxu0 0
        %1348 = vmatpush1.bf16.msra.mxu0 0
        %1349 = vmatprep.subr.bf16.mxu0 0
        %1350 = vmatpush1.bf16.msra.mxu0 0
        %1351 = vmatprep.subr.bf16.mxu0 0
        %1352 = vmatpush1.bf16.msra.mxu0 0
        %1353 = vmatprep.subr.bf16.mxu0 0
        %1354 = vmatpush1.bf16.msra.mxu0 0
        %1355 = vmatprep.subr.bf16.mxu0 0
        %1356 = vmatpush1.bf16.msra.mxu0 0
        %1357 = vmatprep.subr.bf16.mxu0 0
        %1358 = vmatpush1.bf16.msra.mxu0 0
        %1359 = vmatprep.mubr.bf16.mxu0 0
        %1360 = vmatmul.mubr.bf16.gmra.mrb[0].mxu0 %v1239
        %v1361 = vpop.f32.mrb[0].mxu0
        %v1362 = vadd.f32 %v1180, %v1361
        %v1363 = vpop.f32.mrb[0].mxu0
        %v1364 = vpop.f32.mrb[0].mxu0
        %v1365 = vadd.f32 %v1185, %v1364
        %v1366 = vpop.f32.mrb[0].mxu0
        %1367 = vmatprep.mubr.bf16.mxu0 0
        %1368 = vmatmul.mubr.bf16.gmra.mrb[0].mxu0 %v1242
        %v1369 = vpop.f32.mrb[0].mxu0
        %v1370 = vadd.f32 %v1190, %v1369
        %v1371 = vpop.f32.mrb[0].mxu0
        %v1372 = vpop.f32.mrb[0].mxu0
        %v1373 = vadd.f32 %v1195, %v1372
        %v1374 = vpop.f32.mrb[0].mxu0
        %1375 = vmatprep.mubr.bf16.mxu0 0
        %1376 = vmatmul.mubr.bf16.gmra.mrb[0].mxu0 %v1245
        %v1377 = vpop.f32.mrb[0].mxu0
        %v1378 = vadd.f32 %v1200, %v1377
        %v1379 = vpop.f32.mrb[0].mxu0
        %v1380 = vpop.f32.mrb[0].mxu0
        %v1381 = vadd.f32 %v1205, %v1380
        %v1382 = vpop.f32.mrb[0].mxu0
        %1383 = vmatprep.mubr.bf16.mxu0 0
        %1384 = vmatmul.mubr.bf16.gmra.mrb[0].mxu0 %v1248
        %v1385 = vpop.f32.mrb[0].mxu0
        %v1386 = vadd.f32 %v1210, %v1385
        %v1387 = vpop.f32.mrb[0].mxu0
        %v1388 = vpop.f32.mrb[0].mxu0
        %v1389 = vadd.f32 %v1215, %v1388
        %v1390 = vpop.f32.mrb[0].mxu0
        %1391 = vdwg.mxu0
        %v1392 = vtanh.pop %v1362
        %v1393 = vtanh.pop %v1365
        %v1394 = vtanh.pop %v1370
        %v1395 = vtanh.pop %v1373
        %v1396 = vtanh.pop %v1378
        %v1397 = vtanh.pop %v1381
        %v1398 = vtanh.pop %v1386
        %v1399 = vtanh.pop %v1389
        %v1400 = vpack.c.bf16 %v1316, %v1315
        %v1401 = vpack.c.bf16 %v1318, %v1317
        %v1402 = vpack.c.bf16 %v1320, %v1319
        %v1403 = vpack.c.bf16 %v1322, %v1321
        %1405 = vset.pattern.permute.xlu0 0
        %1406 = vperm.xlu0 %1405, %v479
        %v1407 = vpop.permute.xlu0 %1406
        %v1410 = vsel %vm1237, %v447, 0
        %1412 = vmatprep.subr.bf16.mxu0 0
        %1413 = vmatpush1.bf16.msra.mxu0 %v1400
        %1414 = vmatprep.subr.bf16.mxu0 0
        %1415 = vmatpush1.bf16.msra.mxu0 %v1401
        %1416 = vmatprep.subr.bf16.mxu0 0
        %1417 = vmatpush1.bf16.msra.mxu0 %v1402
        %1418 = vmatprep.subr.bf16.mxu0 0
        %1419 = vmatpush1.bf16.msra.mxu0 %v1403
        %1420 = vmatprep.subr.bf16.mxu0 0
        %1421 = vmatpush1.bf16.msra.mxu0 0
        %1422 = vmatprep.subr.bf16.mxu0 0
        %1423 = vmatpush1.bf16.msra.mxu0 0
        %1424 = vmatprep.subr.bf16.mxu0 0
        %1425 = vmatpush1.bf16.msra.mxu0 0
        %1426 = vmatprep.subr.bf16.mxu0 0
        %1427 = vmatpush1.bf16.msra.mxu0 0
        %1428 = vmatprep.subr.bf16.mxu0 0
        %1429 = vmatpush1.bf16.msra.mxu0 0
        %1430 = vmatprep.subr.bf16.mxu0 0
        %1431 = vmatpush1.bf16.msra.mxu0 0
        %1432 = vmatprep.subr.bf16.mxu0 0
        %1433 = vmatpush1.bf16.msra.mxu0 0
        %1434 = vmatprep.subr.bf16.mxu0 0
        %1435 = vmatpush1.bf16.msra.mxu0 0
        %1436 = vmatprep.subr.bf16.mxu0 0
        %1437 = vmatpush1.bf16.msra.mxu0 0
        %1438 = vmatprep.subr.bf16.mxu0 0
        %1439 = vmatpush1.bf16.msra.mxu0 0
        %1440 = vmatprep.subr.bf16.mxu0 0
        %1441 = vmatpush1.bf16.msra.mxu0 0
        %1442 = vmatprep.subr.bf16.mxu0 0
        %1443 = vmatpush1.bf16.msra.mxu0 0
        %1444 = vmatprep.mubr.bf16.mxu0 0
        %1445 = vmatmul.mubr.bf16.gmra.mrb[0].mxu0 %v1410
        %v1446 = vpop.f32.mrb[0].mxu0
        %v1447 = vadd.f32 %v1407, %v1446
        %v1448 = vpop.f32.mrb[0].mxu0
        %v1449 = vpop.f32.mrb[0].mxu0
        %v1450 = vpop.f32.mrb[0].mxu0
        %1451 = vdwg.mxu0
        %1452 = vst [vmem:[%s415] sm:$0xff] %v1447
        %v1453 = vpack.c.bf16 %v1393, %v1392
        %v1454 = vpack.c.bf16 %v1395, %v1394
        %v1455 = vpack.c.bf16 %v1397, %v1396
        %v1456 = vpack.c.bf16 %v1399, %v1398
        %1457 = vmatprep.subr.bf16.mxu0 0
        %1458 = vmatpush1.bf16.msra.mxu0 %v1453
        %1459 = vmatprep.subr.bf16.mxu0 0
        %1460 = vmatpush1.bf16.msra.mxu0 %v1454
        %1461 = vmatprep.subr.bf16.mxu0 0
        %1462 = vmatpush1.bf16.msra.mxu0 %v1455
        %1463 = vmatprep.subr.bf16.mxu0 0
        %1464 = vmatpush1.bf16.msra.mxu0 %v1456
        %1465 = vmatprep.subr.bf16.mxu0 0
        %1466 = vmatpush1.bf16.msra.mxu0 0
        %1467 = vmatprep.subr.bf16.mxu0 0
        %1468 = vmatpush1.bf16.msra.mxu0 0
        %1469 = vmatprep.subr.bf16.mxu0 0
        %1470 = vmatpush1.bf16.msra.mxu0 0
        %1471 = vmatprep.subr.bf16.mxu0 0
        %1472 = vmatpush1.bf16.msra.mxu0 0
        %1473 = vmatprep.subr.bf16.mxu0 0
        %1474 = vmatpush1.bf16.msra.mxu0 0
        %1475 = vmatprep.subr.bf16.mxu0 0
        %1476 = vmatpush1.bf16.msra.mxu0 0
        %1477 = vmatprep.subr.bf16.mxu0 0
        %1478 = vmatpush1.bf16.msra.mxu0 0
        %1479 = vmatprep.subr.bf16.mxu0 0
        %1480 = vmatpush1.bf16.msra.mxu0 0
        %1481 = vmatprep.subr.bf16.mxu0 0
        %1482 = vmatpush1.bf16.msra.mxu0 0
        %1483 = vmatprep.subr.bf16.mxu0 0
        %1484 = vmatpush1.bf16.msra.mxu0 0
        %1485 = vmatprep.subr.bf16.mxu0 0
        %1486 = vmatpush1.bf16.msra.mxu0 0
        %1487 = vmatprep.subr.bf16.mxu0 0
        %1488 = vmatpush1.bf16.msra.mxu0 0
        %1489 = vmatprep.mubr.bf16.mxu0 0
        %1490 = vmatmul.mubr.bf16.gmra.mrb[0].mxu0 %v1410
        %v1491 = vpop.f32.mrb[0].mxu0
        %v1492 = vadd.f32 %v1407, %v1491
        %v1493 = vpop.f32.mrb[0].mxu0
        %v1494 = vpop.f32.mrb[0].mxu0
        %v1495 = vpop.f32.mrb[0].mxu0
        %1496 = vdwg.mxu0
        %1497 = vst [vmem:[%s415 + $0x8] sm:$0xff] %v1492
        %s1498 = smul.u32 2, %s20
        %p1499 = scmp.lt.s32.totalorder %s1498, 3
        %s1500 = scalar_select %p1499, %s1498, 3
        %s1501 = smul.addr %s1500, 8
        %s1502 = scalar_lea.vmem %s9, %s1501
        // Predicated region
        $region80: #{dnn_forward.1} parent=74 // pred_check
          %p1503 = pneg %p232
        $region81: #{dnn_forward.1} parent=74 // pred_check_branch
          %1505 = sbr.rel (%p1503) target = $region83
        $region82: #{dnn_forward.1} parent=74 // pred_region
          %s1506 = smul.u32 2, %s20
        $region83: #{dnn_forward.1} parent=74 // pred_fallthru
          _
      $region75: #{dnn_forward.1} parent=5 // pred_fallthru
        _
      %p1507 = scmp.le.s32.totalorder 2, %s15
      // Predicated region
      $region84: #{dnn_forward.1} parent=5 // pred_check
        %p1508 = pneg %p1507
      $region85: #{dnn_forward.1} parent=5 // pred_check_branch
        %1510 = sbr.rel (%p1508) target = $region87
      $region86: #{dnn_forward.1} parent=5 // pred_region
        %s1511 = ssub.s32 %s15, 2
        // Predicated region
        $region88: #{dnn_forward.1} parent=86 // pred_check
          %p1512 = pneg %p238
        $region89: #{dnn_forward.1} parent=86 // pred_check_branch
          %1514 = sbr.rel (%p1512) target = $region91
        $region90: #{dnn_forward.1} parent=86 // pred_region
          %s1515 = smul.u32 2, %s21
          %p1516 = scmp.lt.s32.totalorder %s1515, 3
          %s1517 = scalar_select %p1516, %s1515, 3
          %s1518 = smul.addr %s1517, 8
          %s1519 = scalar_lea.vmem %s9, %s1518
        $region91: #{dnn_forward.1} parent=86 // pred_fallthru
          _
      $region87: #{dnn_forward.1} parent=5 // pred_fallthru
        _
    $region6: #{dnn_forward.1} parent=1 // loop_footer
      %s19 = sadd.s32 1, %s15
    $region7: #{dnn_forward.1} parent=1 // loop_footer_branch
      %14 = sbr.rel target = $region3
    $region8: #{dnn_forward.1} parent=1 // loop_exit
      _

</llo_original>
